<compile_context>
chip_gen: v5e
topology: v5e:2x2
jax: 0.10.0
libtpu: 0.0.40
codegen_flags: <defaults>
</compile_context>

<pallas_src>
import math
import functools

import jax
import jax.numpy as jnp
from jax.experimental import pallas as pl
from jax.experimental.pallas import tpu as pltpu


def encoder_layer_kernel(
    x_ref,                                   # (1, S, E) f32 : full sequence of this batch row
    wqkv_hbm, wo_hbm, w1_hbm, w2_hbm,        # HBM (ANY) weights, mxu_dtype
    bqkv_ref, bo_ref,                        # (1, 3E), (1, E) f32
    g1_ref, be1_ref, g2_ref, be2_ref,        # (1, E) f32
    b1_ref, b2_ref,                          # (1, F), (1, E) f32
    y_ref,                                   # out (1, TQ, E) f32
    *rest,                                   # [attn_ref (1,H,TQ,S)], scratch refs
    num_heads: int, q_tile: int, return_attn: bool, mxu_dtype,
):
    if return_attn:
        attn_ref = rest[0]
        scratch = rest[1:]
    else:
        attn_ref = None
        scratch = rest
    wqkv_s, wo_s, w1_s, w2_s, qkv_s, dma_sem = scratch

    S, E = x_ref.shape[1], x_ref.shape[2]
    H = num_heads
    Dh = E // H
    TQ = q_tile
    qi = pl.program_id(1)

    def layer_norm(v, g, b):
        mu = jnp.mean(v, axis=-1, keepdims=True)
        d = v - mu
        var = jnp.mean(d * d, axis=-1, keepdims=True)
        return d * jax.lax.rsqrt(var + 1e-5) * g + b

    # ---- per-batch-row prologue (first query tile only) --------------------
    # NOTE: qi is a sequential ("arbitrary") grid axis, so this runs once per
    # batch row on whichever core owns it; weights are single-buffered and the
    # re-fetch cost amortizes over all query tiles of the row.
    @pl.when(qi == 0)
    def _prologue():
        pairs = ((wqkv_hbm, wqkv_s), (wo_hbm, wo_s), (w1_hbm, w1_s), (w2_hbm, w2_s))
        copies = [pltpu.make_async_copy(src, dst, dma_sem.at[i])
                  for i, (src, dst) in enumerate(pairs)]
        for c in copies:
            c.start()
        # LayerNorm of the whole sequence overlaps with the weight DMAs.
        xn = layer_norm(x_ref[0], g1_ref[...], be1_ref[...])            # (S, E) f32
        copies[0].wait()                                                 # Wqkv ready
        # Fused QKV projection for the whole sequence, cached for all q-tiles;
        # Wo/W1/W2 DMAs land while this matmul runs on the MXU.
        qkv = jnp.dot(xn.astype(mxu_dtype), wqkv_s[...],
                      preferred_element_type=jnp.float32) + bqkv_ref[...]  # (S, 3E)
        scale = jnp.float32(1.0 / math.sqrt(Dh))
        qkv_s[:, 0:E] = (qkv[:, 0:E] * scale).astype(qkv_s.dtype)       # scale folded into Q
        qkv_s[:, E:] = qkv[:, E:].astype(qkv_s.dtype)
        for c in copies[1:]:
            c.wait()

    # ---- per query tile -----------------------------------------------------
    row0 = pl.multiple_of(qi * TQ, TQ)
    x_tile = x_ref[0, pl.ds(row0, TQ), :]                 # (TQ, E) f32 (residual)
    q_rows = qkv_s[pl.ds(row0, TQ), 0:E]                  # (TQ, E) mxu, pre-scaled

    attn_out = jnp.zeros((TQ, E), jnp.float32)
    for h in range(H):                                    # static unroll over heads
        q_h = q_rows[:, h * Dh:(h + 1) * Dh]              # (TQ, Dh)
        k_h = qkv_s[:, E + h * Dh: E + (h + 1) * Dh]      # (S, Dh)
        v_h = qkv_s[:, 2 * E + h * Dh: 2 * E + (h + 1) * Dh]
        # scores = q_h @ k_h^T without materializing a transpose (S stays lane-dense)
        s_h = jax.lax.dot_general(q_h, k_h, (((1,), (1,)), ((), ())),
                                  preferred_element_type=jnp.float32)   # (TQ, S)
        m = jnp.max(s_h, axis=-1, keepdims=True)
        e = jnp.exp(s_h - m)
        inv = pl.reciprocal(jnp.sum(e, axis=-1, keepdims=True), approx=True)
        p_h = e * inv                                                    # (TQ, S) f32
        if attn_ref is not None:
            attn_ref[0, h] = p_h
        ctx_h = jnp.dot(p_h.astype(mxu_dtype), v_h,
                        preferred_element_type=jnp.float32)              # (TQ, Dh)
        # head merge + output projection folded into a per-head accumulation
        attn_out = attn_out + jnp.dot(ctx_h.astype(mxu_dtype),
                                      wo_s[h * Dh:(h + 1) * Dh, :],
                                      preferred_element_type=jnp.float32)
    x1 = x_tile + attn_out + bo_ref[...]

    # ---- position-wise feed-forward (pre-norm) ------------------------------
    x2n = layer_norm(x1, g2_ref[...], be2_ref[...])
    hdn = jnp.dot(x2n.astype(mxu_dtype), w1_s[...],
                  preferred_element_type=jnp.float32) + b1_ref[...]      # (TQ, F)
    hdn = 0.5 * hdn * (1.0 + jax.lax.erf(hdn * jnp.float32(1.0 / math.sqrt(2.0))))
    ff = jnp.dot(hdn.astype(mxu_dtype), w2_s[...],
                 preferred_element_type=jnp.float32) + b2_ref[...]
    y_ref[0] = (x1 + ff).astype(y_ref.dtype)


def _pick_q_tile(S):
    for t in (512, 256, 128):        # big tiles amortize per-grid-step overhead
        if S % t == 0:
            return t
    return S                          # small / odd sequence: single tile


def transformer_encoder_layer(x, params, num_heads, *,
                              return_attn_weights=True,
                              mxu_dtype=jnp.bfloat16,
                              q_tile=None):
    B, S, E = x.shape
    F = params['w1'].shape[1]
    H = num_heads
    assert E % H == 0, "embed_dim must be divisible by num_heads"
    TQ = q_tile if q_tile is not None else _pick_q_tile(S)
    assert S % TQ == 0 and (TQ % 8 == 0 or TQ == S)
    nq = S // TQ

    # Fused QKV weight (E, 3E) / bias (1, 3E); big matmul weights in mxu_dtype.
    wqkv = jnp.concatenate([params['wq'], params['wk'], params['wv']], axis=1).astype(mxu_dtype)
    bqkv = jnp.concatenate([params['bq'], params['bk'], params['bv']], axis=1).astype(jnp.float32)
    wo = params['wo'].astype(mxu_dtype)
    w1 = params['w1'].astype(mxu_dtype)
    w2 = params['w2'].astype(mxu_dtype)

    small = [bqkv, params['bo'], params['g1'], params['be1'],
             params['g2'], params['be2'], params['b1'], params['b2']]
    small = [jnp.asarray(p, jnp.float32) for p in small]

    hbm_spec = pl.BlockSpec(memory_space=pl.ANY)

    def small_spec(p):
        return pl.BlockSpec(p.shape, lambda b, qi: (0, 0))

    in_specs = (
        [pl.BlockSpec((1, S, E), lambda b, qi: (b, 0, 0))]
        + [hbm_spec] * 4
        + [small_spec(p) for p in small]
    )

    y_spec = pl.BlockSpec((1, TQ, E), lambda b, qi: (b, qi, 0))
    y_shape = jax.ShapeDtypeStruct((B, S, E), jnp.float32)
    if return_attn_weights:
        out_specs = (y_spec,
                     pl.BlockSpec((1, H, TQ, S), lambda b, qi: (b, 0, qi, 0)))
        out_shape = (y_shape, jax.ShapeDtypeStruct((B, H, S, S), jnp.float32))
    else:
        out_specs = y_spec
        out_shape = y_shape

    scratch_shapes = [
        pltpu.VMEM((E, 3 * E), mxu_dtype),   # Wqkv   (single-buffered)
        pltpu.VMEM((E, E), mxu_dtype),       # Wo
        pltpu.VMEM((E, F), mxu_dtype),       # W1
        pltpu.VMEM((F, E), mxu_dtype),       # W2
        pltpu.VMEM((S, 3 * E), mxu_dtype),   # cached fused QKV for the batch row
        pltpu.SemaphoreType.DMA((4,)),
    ]

    kernel = functools.partial(
        encoder_layer_kernel, num_heads=H, q_tile=TQ,
        return_attn=return_attn_weights, mxu_dtype=mxu_dtype)

    return pl.pallas_call(
        kernel,
        out_shape=out_shape,
        grid_spec=pltpu.PrefetchScalarGridSpec(
            num_scalar_prefetch=0,
            grid=(B, nq),
            in_specs=in_specs,
            out_specs=out_specs,
            scratch_shapes=scratch_shapes,
        ),
        compiler_params=pltpu.CompilerParams(
            # batch axis may be split across TensorCores (v7x megacore); the
            # query-tile axis stays sequential per batch row because the
            # qi == 0 prologue fills this row's weight / QKV scratch.
            dimension_semantics=("parallel", "arbitrary"),
            vmem_limit_bytes=64 * 1024 * 1024,
        ),
    )(x, wqkv, wo, w1, w2, *small)


def init_params(key, embed_dim, num_heads, ff_dim):
    E, F = embed_dim, ff_dim
    keys = jax.random.split(key, 8)
    scale = 0.02

    def lin(k, din, dout):
        # stored transposed: (in, out), so the kernel computes x @ W + b
        return scale * jax.random.normal(k, (din, dout), dtype=jnp.float32)

    params = {
        'wq': lin(keys[0], E, E), 'bq': jnp.zeros((1, E), jnp.float32),
        'wk': lin(keys[1], E, E), 'bk': jnp.zeros((1, E), jnp.float32),
        'wv': lin(keys[2], E, E), 'bv': jnp.zeros((1, E), jnp.float32),
        'wo': lin(keys[3], E, E), 'bo': jnp.zeros((1, E), jnp.float32),
        'g1': jnp.ones((1, E), jnp.float32), 'be1': jnp.zeros((1, E), jnp.float32),
        'g2': jnp.ones((1, E), jnp.float32), 'be2': jnp.zeros((1, E), jnp.float32),
        'w1': lin(keys[4], E, F), 'b1': jnp.zeros((1, F), jnp.float32),
        'w2': lin(keys[5], F, E), 'b2': jnp.zeros((1, E), jnp.float32),
    }
    params['bq'] = params['bq'] + 0.01
    params['b1'] = params['b1'] + 0.01
    return params


def reference_forward(x, params, num_heads):
    """Pure-JAX f32 reference of the PyTorch module (eval mode)."""
    B, S, E = x.shape
    H = num_heads
    Dh = E // H

    def ln(v, g, b):
        mu = jnp.mean(v, axis=-1, keepdims=True)
        var = jnp.mean((v - mu) ** 2, axis=-1, keepdims=True)
        return (v - mu) / jnp.sqrt(var + 1e-5) * g + b

    xn = ln(x, params['g1'], params['be1'])
    q = xn @ params['wq'] + params['bq']
    k = xn @ params['wk'] + params['bk']
    v = xn @ params['wv'] + params['bv']

    def split(t):
        return t.reshape(B, S, H, Dh).transpose(0, 2, 1, 3)   # (B, H, S, Dh)

    qh, kh, vh = split(q), split(k), split(v)
    scores = jnp.einsum('bhsd,bhtd->bhst', qh, kh) / math.sqrt(Dh)
    attn = jax.nn.softmax(scores, axis=-1)
    ctx = jnp.einsum('bhst,bhtd->bhsd', attn, vh)
    ctx = ctx.transpose(0, 2, 1, 3).reshape(B, S, E)
    x1 = x + ctx @ params['wo'] + params['bo']
    x2n = ln(x1, params['g2'], params['be2'])
    h = x2n @ params['w1'] + params['b1']
    h = 0.5 * h * (1.0 + jax.lax.erf(h / math.sqrt(2.0)))
    y = x1 + h @ params['w2'] + params['b2']
    return y, attn


if __name__ == "__main__":
    B, S, E, H, F = 2, 8, 32, 4, 64   # batch, seq, embed_dim, heads, ff_dim

    key = jax.random.PRNGKey(0)
    kx, kp = jax.random.split(key)
    x = jax.random.normal(kx, (B, S, E), dtype=jnp.float32)
    params = init_params(kp, E, H, F)

    # Module-faithful path: returns (y, per-head attention weights).
    y, attn = transformer_encoder_layer(x, params, num_heads=H)
    jax.block_until_ready((y, attn))
    assert y.shape == (B, S, E)
    assert attn.shape == (B, H, S, S)

    # Fast inference path: skips the O(B*H*S^2) attention-weights writeback.
    y_fast = transformer_encoder_layer(x, params, num_heads=H,
                                       return_attn_weights=False)
    jax.block_until_ready(y_fast)
    assert y_fast.shape == (B, S, E)

    # Numerical sanity vs. a pure-JAX f32 reference (kernel uses bf16 MXU operands
    # with f32 accumulation, and an approximate softmax reciprocal).
    y_exp, attn_exp = reference_forward(x, params, num_heads=H)
    assert jnp.allclose(y, y_exp, atol=2e-2, rtol=2e-2), \
        float(jnp.max(jnp.abs(y - y_exp)))
    assert jnp.allclose(attn, attn_exp, atol=2e-2), \
        float(jnp.max(jnp.abs(attn - attn_exp)))
    assert jnp.allclose(y, y_fast, atol=1e-3)

    print("KERNEL_OK")
</pallas_src>

<mosaic_0001>
module attributes {stable_mosaic.version = 11 : i64} {
  func.func @encoder_layer_kernel(%arg0: i32, %arg1: i32, %arg2: memref<1x8x32xf32, #tpu.memory_space<vmem>>, %arg3: memref<32x96xbf16, #tpu.memory_space<any>>, %arg4: memref<32x32xbf16, #tpu.memory_space<any>>, %arg5: memref<32x64xbf16, #tpu.memory_space<any>>, %arg6: memref<64x32xbf16, #tpu.memory_space<any>>, %arg7: memref<1x96xf32, #tpu.memory_space<vmem>>, %arg8: memref<1x32xf32, #tpu.memory_space<vmem>>, %arg9: memref<1x32xf32, #tpu.memory_space<vmem>>, %arg10: memref<1x32xf32, #tpu.memory_space<vmem>>, %arg11: memref<1x32xf32, #tpu.memory_space<vmem>>, %arg12: memref<1x32xf32, #tpu.memory_space<vmem>>, %arg13: memref<1x64xf32, #tpu.memory_space<vmem>>, %arg14: memref<1x32xf32, #tpu.memory_space<vmem>>, %arg15: memref<1x8x32xf32, #tpu.memory_space<vmem>>, %arg16: memref<1x4x8x8xf32, #tpu.memory_space<vmem>>, %arg17: memref<32x96xbf16, #tpu.memory_space<vmem>>, %arg18: memref<32x32xbf16, #tpu.memory_space<vmem>>, %arg19: memref<32x64xbf16, #tpu.memory_space<vmem>>, %arg20: memref<64x32xbf16, #tpu.memory_space<vmem>>, %arg21: memref<8x96xbf16, #tpu.memory_space<vmem>>, %arg22: memref<4x!tpu.dma_semaphore, #tpu.memory_space<semaphore_mem>>) attributes {dimension_semantics = [#tpu.dimension_semantics<parallel>, #tpu.dimension_semantics<arbitrary>], iteration_bounds = array<i64: 2, 1>, scalar_prefetch = 0 : i64, scratch_operands = 6 : i64, tpu.core_type = #tpu.core_type<tc>, window_params = [{transform_indices = @transform_0, window_bounds = array<i64: 1, 8, 32>}, {}, {}, {}, {}, {pipeline_mode = #tpu.pipeline_mode<synchronous>, transform_indices = @transform_5, window_bounds = array<i64: 1, 96>}, {pipeline_mode = #tpu.pipeline_mode<synchronous>, transform_indices = @transform_6, window_bounds = array<i64: 1, 32>}, {pipeline_mode = #tpu.pipeline_mode<synchronous>, transform_indices = @transform_7, window_bounds = array<i64: 1, 32>}, {pipeline_mode = #tpu.pipeline_mode<synchronous>, transform_indices = @transform_8, window_bounds = array<i64: 1, 32>}, {pipeline_mode = #tpu.pipeline_mode<synchronous>, transform_indices = @transform_9, window_bounds = array<i64: 1, 32>}, {pipeline_mode = #tpu.pipeline_mode<synchronous>, transform_indices = @transform_10, window_bounds = array<i64: 1, 32>}, {pipeline_mode = #tpu.pipeline_mode<synchronous>, transform_indices = @transform_11, window_bounds = array<i64: 1, 64>}, {pipeline_mode = #tpu.pipeline_mode<synchronous>, transform_indices = @transform_12, window_bounds = array<i64: 1, 32>}, {transform_indices = @transform_13, window_bounds = array<i64: 1, 8, 32>}, {transform_indices = @transform_14, window_bounds = array<i64: 1, 4, 8, 8>}]} {
    %c0_i32 = arith.constant 0 : i32
    %0 = arith.cmpi eq, %arg1, %c0_i32 : i32
    %1 = arith.extui %0 : i1 to i32
    %c0_i32_0 = arith.constant 0 : i32
    %2 = arith.cmpi ne, %1, %c0_i32_0 : i32
    scf.if %2 {
      %c0_i32_76 = arith.constant 0 : i32
      %153 = tpu.memref_slice %arg22[%c0_i32_76] : memref<4x!tpu.dma_semaphore, #tpu.memory_space<semaphore_mem>> -> memref<1x!tpu.dma_semaphore, #tpu.memory_space<semaphore_mem>>
      %154 = tpu.memref_squeeze %153 : memref<1x!tpu.dma_semaphore, #tpu.memory_space<semaphore_mem>> -> memref<!tpu.dma_semaphore, #tpu.memory_space<semaphore_mem>>
      tpu.enqueue_dma source(%arg3 : memref<32x96xbf16, #tpu.memory_space<any>>) target(%arg17 : memref<32x96xbf16, #tpu.memory_space<vmem>>) target_semaphore(%154 : memref<!tpu.dma_semaphore, #tpu.memory_space<semaphore_mem>>)
      %c1_i32 = arith.constant 1 : i32
      %155 = tpu.memref_slice %arg22[%c1_i32] : memref<4x!tpu.dma_semaphore, #tpu.memory_space<semaphore_mem>> -> memref<1x!tpu.dma_semaphore, #tpu.memory_space<semaphore_mem>>
      %156 = tpu.memref_squeeze %155 : memref<1x!tpu.dma_semaphore, #tpu.memory_space<semaphore_mem>> -> memref<!tpu.dma_semaphore, #tpu.memory_space<semaphore_mem>>
      tpu.enqueue_dma source(%arg4 : memref<32x32xbf16, #tpu.memory_space<any>>) target(%arg18 : memref<32x32xbf16, #tpu.memory_space<vmem>>) target_semaphore(%156 : memref<!tpu.dma_semaphore, #tpu.memory_space<semaphore_mem>>)
      %c2_i32 = arith.constant 2 : i32
      %157 = tpu.memref_slice %arg22[%c2_i32] : memref<4x!tpu.dma_semaphore, #tpu.memory_space<semaphore_mem>> -> memref<1x!tpu.dma_semaphore, #tpu.memory_space<semaphore_mem>>
      %158 = tpu.memref_squeeze %157 : memref<1x!tpu.dma_semaphore, #tpu.memory_space<semaphore_mem>> -> memref<!tpu.dma_semaphore, #tpu.memory_space<semaphore_mem>>
      tpu.enqueue_dma source(%arg5 : memref<32x64xbf16, #tpu.memory_space<any>>) target(%arg19 : memref<32x64xbf16, #tpu.memory_space<vmem>>) target_semaphore(%158 : memref<!tpu.dma_semaphore, #tpu.memory_space<semaphore_mem>>)
      %c3_i32 = arith.constant 3 : i32
      %159 = tpu.memref_slice %arg22[%c3_i32] : memref<4x!tpu.dma_semaphore, #tpu.memory_space<semaphore_mem>> -> memref<1x!tpu.dma_semaphore, #tpu.memory_space<semaphore_mem>>
      %160 = tpu.memref_squeeze %159 : memref<1x!tpu.dma_semaphore, #tpu.memory_space<semaphore_mem>> -> memref<!tpu.dma_semaphore, #tpu.memory_space<semaphore_mem>>
      tpu.enqueue_dma source(%arg6 : memref<64x32xbf16, #tpu.memory_space<any>>) target(%arg20 : memref<64x32xbf16, #tpu.memory_space<vmem>>) target_semaphore(%160 : memref<!tpu.dma_semaphore, #tpu.memory_space<semaphore_mem>>)
      %c0_77 = arith.constant 0 : index
      %c0_78 = arith.constant 0 : index
      %c0_79 = arith.constant 0 : index
      %161 = vector.load %arg2[%c0_77, %c0_78, %c0_79] : memref<1x8x32xf32, #tpu.memory_space<vmem>>, vector<1x8x32xf32>
      %162 = vector.shape_cast %161 : vector<1x8x32xf32> to vector<8x32xf32>
      %c0_80 = arith.constant 0 : index
      %c0_81 = arith.constant 0 : index
      %163 = vector.load %arg9[%c0_80, %c0_81] : memref<1x32xf32, #tpu.memory_space<vmem>>, vector<1x32xf32>
      %c0_82 = arith.constant 0 : index
      %c0_83 = arith.constant 0 : index
      %164 = vector.load %arg10[%c0_82, %c0_83] : memref<1x32xf32, #tpu.memory_space<vmem>>, vector<1x32xf32>
      %cst_84 = arith.constant dense<0.000000e+00> : vector<8xf32>
      %165 = vector.multi_reduction <add>, %162, %cst_84 [1] : vector<8x32xf32> to vector<8xf32>
      %166 = vector.shape_cast %165 : vector<8xf32> to vector<8x1xf32>
      %cst_85 = arith.constant 3.200000e+01 : f32
      %167 = vector.broadcast %cst_85 : f32 to vector<8x1xf32>
      %168 = arith.divf %166, %167 : vector<8x1xf32>
      %169 = vector.broadcast %168 : vector<8x1xf32> to vector<8x32xf32>
      %170 = arith.subf %162, %169 : vector<8x32xf32>
      %171 = arith.mulf %170, %170 : vector<8x32xf32>
      %cst_86 = arith.constant dense<0.000000e+00> : vector<8xf32>
      %172 = vector.multi_reduction <add>, %171, %cst_86 [1] : vector<8x32xf32> to vector<8xf32>
      %173 = vector.shape_cast %172 : vector<8xf32> to vector<8x1xf32>
      %cst_87 = arith.constant 3.200000e+01 : f32
      %174 = vector.broadcast %cst_87 : f32 to vector<8x1xf32>
      %175 = arith.divf %173, %174 : vector<8x1xf32>
      %cst_88 = arith.constant 9.99999974E-6 : f32
      %176 = vector.broadcast %cst_88 : f32 to vector<8x1xf32>
      %177 = arith.addf %175, %176 : vector<8x1xf32>
      %178 = math.rsqrt %177 : vector<8x1xf32>
      %179 = vector.broadcast %178 : vector<8x1xf32> to vector<8x32xf32>
      %180 = arith.mulf %170, %179 : vector<8x32xf32>
      %181 = vector.broadcast %163 : vector<1x32xf32> to vector<8x32xf32>
      %182 = arith.mulf %180, %181 : vector<8x32xf32>
      %183 = vector.broadcast %164 : vector<1x32xf32> to vector<8x32xf32>
      %184 = arith.addf %182, %183 : vector<8x32xf32>
      %c0_i32_89 = arith.constant 0 : i32
      %185 = tpu.memref_slice %arg22[%c0_i32_89] : memref<4x!tpu.dma_semaphore, #tpu.memory_space<semaphore_mem>> -> memref<1x!tpu.dma_semaphore, #tpu.memory_space<semaphore_mem>>
      %186 = tpu.memref_squeeze %185 : memref<1x!tpu.dma_semaphore, #tpu.memory_space<semaphore_mem>> -> memref<!tpu.dma_semaphore, #tpu.memory_space<semaphore_mem>>
      tpu.wait_dma2 semaphore(%186 : memref<!tpu.dma_semaphore, #tpu.memory_space<semaphore_mem>>) src(%arg3 : memref<32x96xbf16, #tpu.memory_space<any>>) dst(%arg17 : memref<32x96xbf16, #tpu.memory_space<vmem>>)
      %187 = arith.truncf %184 : vector<8x32xf32> to vector<8x32xbf16>
      %c0_90 = arith.constant 0 : index
      %c0_91 = arith.constant 0 : index
      %188 = vector.load %arg17[%c0_90, %c0_91] : memref<32x96xbf16, #tpu.memory_space<vmem>>, vector<32x96xbf16>
      %cst_92 = arith.constant dense<0.000000e+00> : vector<8x96xf32>
      %189 = tpu.matmul %187, %188, %cst_92 {dimension_numbers = #tpu.dot_dimension_numbers<[1], [0], [0], [1], [0, 0, 1, 1], [], []>} : vector<8x32xbf16>, vector<32x96xbf16>, vector<8x96xf32> -> vector<8x96xf32>
      %c0_93 = arith.constant 0 : index
      %c0_94 = arith.constant 0 : index
      %190 = vector.load %arg7[%c0_93, %c0_94] : memref<1x96xf32, #tpu.memory_space<vmem>>, vector<1x96xf32>
      %191 = vector.broadcast %190 : vector<1x96xf32> to vector<8x96xf32>
      %192 = arith.addf %189, %191 : vector<8x96xf32>
      %193 = vector.extract_strided_slice %192 {offsets = [0, 0], sizes = [8, 32], strides = [1, 1]} : vector<8x96xf32> to vector<8x32xf32>
      %cst_95 = arith.constant 0.353553385 : f32
      %194 = vector.broadcast %cst_95 : f32 to vector<8x32xf32>
      %195 = arith.mulf %193, %194 : vector<8x32xf32>
      %196 = arith.truncf %195 : vector<8x32xf32> to vector<8x32xbf16>
      %c0_96 = arith.constant 0 : index
      %c0_97 = arith.constant 0 : index
      %197 = vector.load %arg21[%c0_96, %c0_97] : memref<8x96xbf16, #tpu.memory_space<vmem>>, vector<8x32xbf16>
      tpu.vector_store %arg21[%c0_96, %c0_97], %196 {strides = array<i32>} : memref<8x96xbf16, #tpu.memory_space<vmem>>, vector<8x32xbf16>,
      %198 = vector.extract_strided_slice %192 {offsets = [0, 32], sizes = [8, 64], strides = [1, 1]} : vector<8x96xf32> to vector<8x64xf32>
      %199 = arith.truncf %198 : vector<8x64xf32> to vector<8x64xbf16>
      %c0_98 = arith.constant 0 : index
      %c32_99 = arith.constant 32 : index
      %200 = vector.load %arg21[%c0_98, %c32_99] : memref<8x96xbf16, #tpu.memory_space<vmem>>, vector<8x64xbf16>
      tpu.vector_store %arg21[%c0_98, %c32_99], %199 {strides = array<i32>} : memref<8x96xbf16, #tpu.memory_space<vmem>>, vector<8x64xbf16>,
      %c1_i32_100 = arith.constant 1 : i32
      %201 = tpu.memref_slice %arg22[%c1_i32_100] : memref<4x!tpu.dma_semaphore, #tpu.memory_space<semaphore_mem>> -> memref<1x!tpu.dma_semaphore, #tpu.memory_space<semaphore_mem>>
      %202 = tpu.memref_squeeze %201 : memref<1x!tpu.dma_semaphore, #tpu.memory_space<semaphore_mem>> -> memref<!tpu.dma_semaphore, #tpu.memory_space<semaphore_mem>>
      tpu.wait_dma2 semaphore(%202 : memref<!tpu.dma_semaphore, #tpu.memory_space<semaphore_mem>>) src(%arg4 : memref<32x32xbf16, #tpu.memory_space<any>>) dst(%arg18 : memref<32x32xbf16, #tpu.memory_space<vmem>>)
      %c2_i32_101 = arith.constant 2 : i32
      %203 = tpu.memref_slice %arg22[%c2_i32_101] : memref<4x!tpu.dma_semaphore, #tpu.memory_space<semaphore_mem>> -> memref<1x!tpu.dma_semaphore, #tpu.memory_space<semaphore_mem>>
      %204 = tpu.memref_squeeze %203 : memref<1x!tpu.dma_semaphore, #tpu.memory_space<semaphore_mem>> -> memref<!tpu.dma_semaphore, #tpu.memory_space<semaphore_mem>>
      tpu.wait_dma2 semaphore(%204 : memref<!tpu.dma_semaphore, #tpu.memory_space<semaphore_mem>>) src(%arg5 : memref<32x64xbf16, #tpu.memory_space<any>>) dst(%arg19 : memref<32x64xbf16, #tpu.memory_space<vmem>>)
      %c3_i32_102 = arith.constant 3 : i32
      %205 = tpu.memref_slice %arg22[%c3_i32_102] : memref<4x!tpu.dma_semaphore, #tpu.memory_space<semaphore_mem>> -> memref<1x!tpu.dma_semaphore, #tpu.memory_space<semaphore_mem>>
      %206 = tpu.memref_squeeze %205 : memref<1x!tpu.dma_semaphore, #tpu.memory_space<semaphore_mem>> -> memref<!tpu.dma_semaphore, #tpu.memory_space<semaphore_mem>>
      tpu.wait_dma2 semaphore(%206 : memref<!tpu.dma_semaphore, #tpu.memory_space<semaphore_mem>>) src(%arg6 : memref<64x32xbf16, #tpu.memory_space<any>>) dst(%arg20 : memref<64x32xbf16, #tpu.memory_space<vmem>>)
    } else {
    }
    %c8_i32 = arith.constant 8 : i32
    %3 = arith.muli %arg1, %c8_i32 : i32
    %4 = tpu.assume_multiple %3, 8 : i32
    %c0 = arith.constant 0 : index
    %5 = arith.index_cast %4 : i32 to index
    %c0_1 = arith.constant 0 : index
    %6 = vector.load %arg2[%c0, %5, %c0_1] : memref<1x8x32xf32, #tpu.memory_space<vmem>>, vector<1x8x32xf32>
    %7 = vector.shape_cast %6 : vector<1x8x32xf32> to vector<8x32xf32>
    %8 = arith.index_cast %4 : i32 to index
    %c0_2 = arith.constant 0 : index
    %9 = vector.load %arg21[%8, %c0_2] : memref<8x96xbf16, #tpu.memory_space<vmem>>, vector<8x32xbf16>
    %cst = arith.constant 0.000000e+00 : f32
    %10 = vector.broadcast %cst : f32 to vector<8x32xf32>
    %11 = vector.extract_strided_slice %9 {offsets = [0, 0], sizes = [8, 8], strides = [1, 1]} : vector<8x32xbf16> to vector<8x8xbf16>
    %c0_3 = arith.constant 0 : index
    %c32 = arith.constant 32 : index
    %12 = vector.load %arg21[%c0_3, %c32] : memref<8x96xbf16, #tpu.memory_space<vmem>>, vector<8x8xbf16>
    %c0_4 = arith.constant 0 : index
    %c64 = arith.constant 64 : index
    %13 = vector.load %arg21[%c0_4, %c64] : memref<8x96xbf16, #tpu.memory_space<vmem>>, vector<8x8xbf16>
    %cst_5 = arith.constant dense<0.000000e+00> : vector<8x8xf32>
    %14 = tpu.matmul %11, %12, %cst_5 {dimension_numbers = #tpu.dot_dimension_numbers<[1], [1], [0], [0], [0, 0, 1, 0], [], []>} : vector<8x8xbf16>, vector<8x8xbf16>, vector<8x8xf32> -> vector<8x8xf32>
    %cst_6 = arith.constant dense<0xFF800000> : vector<8xf32>
    %15 = vector.multi_reduction <maximumf>, %14, %cst_6 [1] : vector<8x8xf32> to vector<8xf32>
    %16 = vector.shape_cast %15 : vector<8xf32> to vector<8x1xf32>
    %17 = vector.broadcast %16 : vector<8x1xf32> to vector<8x8xf32>
    %18 = arith.subf %14, %17 : vector<8x8xf32>
    %19 = math.exp %18 : vector<8x8xf32>
    %cst_7 = arith.constant dense<0.000000e+00> : vector<8xf32>
    %20 = vector.multi_reduction <add>, %19, %cst_7 [1] : vector<8x8xf32> to vector<8xf32>
    %21 = vector.shape_cast %20 : vector<8xf32> to vector<8x1xf32>
    %22 = tpu.reciprocal %21 {approx = true} : vector<8x1xf32> -> vector<8x1xf32>
    %23 = vector.broadcast %22 : vector<8x1xf32> to vector<8x8xf32>
    %24 = arith.mulf %19, %23 : vector<8x8xf32>
    %c0_8 = arith.constant 0 : index
    %c0_9 = arith.constant 0 : index
    %c0_10 = arith.constant 0 : index
    %c0_11 = arith.constant 0 : index
    %25 = vector.load %arg16[%c0_8, %c0_9, %c0_10, %c0_11] : memref<1x4x8x8xf32, #tpu.memory_space<vmem>>, vector<1x1x8x8xf32>
    %26 = vector.shape_cast %25 : vector<1x1x8x8xf32> to vector<8x8xf32>
    %27 = vector.shape_cast %24 : vector<8x8xf32> to vector<1x1x8x8xf32>
    tpu.vector_store %arg16[%c0_8, %c0_9, %c0_10, %c0_11], %27 {strides = array<i32>} : memref<1x4x8x8xf32, #tpu.memory_space<vmem>>, vector<1x1x8x8xf32>,
    %28 = arith.truncf %24 : vector<8x8xf32> to vector<8x8xbf16>
    %cst_12 = arith.constant dense<0.000000e+00> : vector<8x8xf32>
    %29 = tpu.matmul %28, %13, %cst_12 {dimension_numbers = #tpu.dot_dimension_numbers<[1], [0], [0], [1], [0, 0, 1, 1], [], []>} : vector<8x8xbf16>, vector<8x8xbf16>, vector<8x8xf32> -> vector<8x8xf32>
    %30 = arith.truncf %29 : vector<8x8xf32> to vector<8x8xbf16>
    %c0_13 = arith.constant 0 : index
    %c0_14 = arith.constant 0 : index
    %31 = vector.load %arg18[%c0_13, %c0_14] : memref<32x32xbf16, #tpu.memory_space<vmem>>, vector<8x32xbf16>
    %cst_15 = arith.constant dense<0.000000e+00> : vector<8x32xf32>
    %32 = tpu.matmul %30, %31, %cst_15 {dimension_numbers = #tpu.dot_dimension_numbers<[1], [0], [0], [1], [0, 0, 1, 1], [], []>} : vector<8x8xbf16>, vector<8x32xbf16>, vector<8x32xf32> -> vector<8x32xf32>
    %33 = arith.addf %10, %32 : vector<8x32xf32>
    %34 = vector.extract_strided_slice %9 {offsets = [0, 8], sizes = [8, 8], strides = [1, 1]} : vector<8x32xbf16> to vector<8x8xbf16>
    %c0_16 = arith.constant 0 : index
    %c40 = arith.constant 40 : index
    %35 = vector.load %arg21[%c0_16, %c40] : memref<8x96xbf16, #tpu.memory_space<vmem>>, vector<8x8xbf16>
    %c0_17 = arith.constant 0 : index
    %c72 = arith.constant 72 : index
    %36 = vector.load %arg21[%c0_17, %c72] : memref<8x96xbf16, #tpu.memory_space<vmem>>, vector<8x8xbf16>
    %cst_18 = arith.constant dense<0.000000e+00> : vector<8x8xf32>
    %37 = tpu.matmul %34, %35, %cst_18 {dimension_numbers = #tpu.dot_dimension_numbers<[1], [1], [0], [0], [0, 0, 1, 0], [], []>} : vector<8x8xbf16>, vector<8x8xbf16>, vector<8x8xf32> -> vector<8x8xf32>
    %cst_19 = arith.constant dense<0xFF800000> : vector<8xf32>
    %38 = vector.multi_reduction <maximumf>, %37, %cst_19 [1] : vector<8x8xf32> to vector<8xf32>
    %39 = vector.shape_cast %38 : vector<8xf32> to vector<8x1xf32>
    %40 = vector.broadcast %39 : vector<8x1xf32> to vector<8x8xf32>
    %41 = arith.subf %37, %40 : vector<8x8xf32>
    %42 = math.exp %41 : vector<8x8xf32>
    %cst_20 = arith.constant dense<0.000000e+00> : vector<8xf32>
    %43 = vector.multi_reduction <add>, %42, %cst_20 [1] : vector<8x8xf32> to vector<8xf32>
    %44 = vector.shape_cast %43 : vector<8xf32> to vector<8x1xf32>
    %45 = tpu.reciprocal %44 {approx = true} : vector<8x1xf32> -> vector<8x1xf32>
    %46 = vector.broadcast %45 : vector<8x1xf32> to vector<8x8xf32>
    %47 = arith.mulf %42, %46 : vector<8x8xf32>
    %c0_21 = arith.constant 0 : index
    %c1 = arith.constant 1 : index
    %c0_22 = arith.constant 0 : index
    %c0_23 = arith.constant 0 : index
    %48 = vector.load %arg16[%c0_21, %c1, %c0_22, %c0_23] : memref<1x4x8x8xf32, #tpu.memory_space<vmem>>, vector<1x1x8x8xf32>
    %49 = vector.shape_cast %48 : vector<1x1x8x8xf32> to vector<8x8xf32>
    %50 = vector.shape_cast %47 : vector<8x8xf32> to vector<1x1x8x8xf32>
    tpu.vector_store %arg16[%c0_21, %c1, %c0_22, %c0_23], %50 {strides = array<i32>} : memref<1x4x8x8xf32, #tpu.memory_space<vmem>>, vector<1x1x8x8xf32>,
    %51 = arith.truncf %47 : vector<8x8xf32> to vector<8x8xbf16>
    %cst_24 = arith.constant dense<0.000000e+00> : vector<8x8xf32>
    %52 = tpu.matmul %51, %36, %cst_24 {dimension_numbers = #tpu.dot_dimension_numbers<[1], [0], [0], [1], [0, 0, 1, 1], [], []>} : vector<8x8xbf16>, vector<8x8xbf16>, vector<8x8xf32> -> vector<8x8xf32>
    %53 = arith.truncf %52 : vector<8x8xf32> to vector<8x8xbf16>
    %c8 = arith.constant 8 : index
    %c0_25 = arith.constant 0 : index
    %54 = vector.load %arg18[%c8, %c0_25] : memref<32x32xbf16, #tpu.memory_space<vmem>>, vector<8x32xbf16>
    %cst_26 = arith.constant dense<0.000000e+00> : vector<8x32xf32>
    %55 = tpu.matmul %53, %54, %cst_26 {dimension_numbers = #tpu.dot_dimension_numbers<[1], [0], [0], [1], [0, 0, 1, 1], [], []>} : vector<8x8xbf16>, vector<8x32xbf16>, vector<8x32xf32> -> vector<8x32xf32>
    %56 = arith.addf %33, %55 : vector<8x32xf32>
    %57 = vector.extract_strided_slice %9 {offsets = [0, 16], sizes = [8, 8], strides = [1, 1]} : vector<8x32xbf16> to vector<8x8xbf16>
    %c0_27 = arith.constant 0 : index
    %c48 = arith.constant 48 : index
    %58 = vector.load %arg21[%c0_27, %c48] : memref<8x96xbf16, #tpu.memory_space<vmem>>, vector<8x8xbf16>
    %c0_28 = arith.constant 0 : index
    %c80 = arith.constant 80 : index
    %59 = vector.load %arg21[%c0_28, %c80] : memref<8x96xbf16, #tpu.memory_space<vmem>>, vector<8x8xbf16>
    %cst_29 = arith.constant dense<0.000000e+00> : vector<8x8xf32>
    %60 = tpu.matmul %57, %58, %cst_29 {dimension_numbers = #tpu.dot_dimension_numbers<[1], [1], [0], [0], [0, 0, 1, 0], [], []>} : vector<8x8xbf16>, vector<8x8xbf16>, vector<8x8xf32> -> vector<8x8xf32>
    %cst_30 = arith.constant dense<0xFF800000> : vector<8xf32>
    %61 = vector.multi_reduction <maximumf>, %60, %cst_30 [1] : vector<8x8xf32> to vector<8xf32>
    %62 = vector.shape_cast %61 : vector<8xf32> to vector<8x1xf32>
    %63 = vector.broadcast %62 : vector<8x1xf32> to vector<8x8xf32>
    %64 = arith.subf %60, %63 : vector<8x8xf32>
    %65 = math.exp %64 : vector<8x8xf32>
    %cst_31 = arith.constant dense<0.000000e+00> : vector<8xf32>
    %66 = vector.multi_reduction <add>, %65, %cst_31 [1] : vector<8x8xf32> to vector<8xf32>
    %67 = vector.shape_cast %66 : vector<8xf32> to vector<8x1xf32>
    %68 = tpu.reciprocal %67 {approx = true} : vector<8x1xf32> -> vector<8x1xf32>
    %69 = vector.broadcast %68 : vector<8x1xf32> to vector<8x8xf32>
    %70 = arith.mulf %65, %69 : vector<8x8xf32>
    %c0_32 = arith.constant 0 : index
    %c2 = arith.constant 2 : index
    %c0_33 = arith.constant 0 : index
    %c0_34 = arith.constant 0 : index
    %71 = vector.load %arg16[%c0_32, %c2, %c0_33, %c0_34] : memref<1x4x8x8xf32, #tpu.memory_space<vmem>>, vector<1x1x8x8xf32>
    %72 = vector.shape_cast %71 : vector<1x1x8x8xf32> to vector<8x8xf32>
    %73 = vector.shape_cast %70 : vector<8x8xf32> to vector<1x1x8x8xf32>
    tpu.vector_store %arg16[%c0_32, %c2, %c0_33, %c0_34], %73 {strides = array<i32>} : memref<1x4x8x8xf32, #tpu.memory_space<vmem>>, vector<1x1x8x8xf32>,
    %74 = arith.truncf %70 : vector<8x8xf32> to vector<8x8xbf16>
    %cst_35 = arith.constant dense<0.000000e+00> : vector<8x8xf32>
    %75 = tpu.matmul %74, %59, %cst_35 {dimension_numbers = #tpu.dot_dimension_numbers<[1], [0], [0], [1], [0, 0, 1, 1], [], []>} : vector<8x8xbf16>, vector<8x8xbf16>, vector<8x8xf32> -> vector<8x8xf32>
    %76 = arith.truncf %75 : vector<8x8xf32> to vector<8x8xbf16>
    %c16 = arith.constant 16 : index
    %c0_36 = arith.constant 0 : index
    %77 = vector.load %arg18[%c16, %c0_36] : memref<32x32xbf16, #tpu.memory_space<vmem>>, vector<8x32xbf16>
    %cst_37 = arith.constant dense<0.000000e+00> : vector<8x32xf32>
    %78 = tpu.matmul %76, %77, %cst_37 {dimension_numbers = #tpu.dot_dimension_numbers<[1], [0], [0], [1], [0, 0, 1, 1], [], []>} : vector<8x8xbf16>, vector<8x32xbf16>, vector<8x32xf32> -> vector<8x32xf32>
    %79 = arith.addf %56, %78 : vector<8x32xf32>
    %80 = vector.extract_strided_slice %9 {offsets = [0, 24], sizes = [8, 8], strides = [1, 1]} : vector<8x32xbf16> to vector<8x8xbf16>
    %c0_38 = arith.constant 0 : index
    %c56 = arith.constant 56 : index
    %81 = vector.load %arg21[%c0_38, %c56] : memref<8x96xbf16, #tpu.memory_space<vmem>>, vector<8x8xbf16>
    %c0_39 = arith.constant 0 : index
    %c88 = arith.constant 88 : index
    %82 = vector.load %arg21[%c0_39, %c88] : memref<8x96xbf16, #tpu.memory_space<vmem>>, vector<8x8xbf16>
    %cst_40 = arith.constant dense<0.000000e+00> : vector<8x8xf32>
    %83 = tpu.matmul %80, %81, %cst_40 {dimension_numbers = #tpu.dot_dimension_numbers<[1], [1], [0], [0], [0, 0, 1, 0], [], []>} : vector<8x8xbf16>, vector<8x8xbf16>, vector<8x8xf32> -> vector<8x8xf32>
    %cst_41 = arith.constant dense<0xFF800000> : vector<8xf32>
    %84 = vector.multi_reduction <maximumf>, %83, %cst_41 [1] : vector<8x8xf32> to vector<8xf32>
    %85 = vector.shape_cast %84 : vector<8xf32> to vector<8x1xf32>
    %86 = vector.broadcast %85 : vector<8x1xf32> to vector<8x8xf32>
    %87 = arith.subf %83, %86 : vector<8x8xf32>
    %88 = math.exp %87 : vector<8x8xf32>
    %cst_42 = arith.constant dense<0.000000e+00> : vector<8xf32>
    %89 = vector.multi_reduction <add>, %88, %cst_42 [1] : vector<8x8xf32> to vector<8xf32>
    %90 = vector.shape_cast %89 : vector<8xf32> to vector<8x1xf32>
    %91 = tpu.reciprocal %90 {approx = true} : vector<8x1xf32> -> vector<8x1xf32>
    %92 = vector.broadcast %91 : vector<8x1xf32> to vector<8x8xf32>
    %93 = arith.mulf %88, %92 : vector<8x8xf32>
    %c0_43 = arith.constant 0 : index
    %c3 = arith.constant 3 : index
    %c0_44 = arith.constant 0 : index
    %c0_45 = arith.constant 0 : index
    %94 = vector.load %arg16[%c0_43, %c3, %c0_44, %c0_45] : memref<1x4x8x8xf32, #tpu.memory_space<vmem>>, vector<1x1x8x8xf32>
    %95 = vector.shape_cast %94 : vector<1x1x8x8xf32> to vector<8x8xf32>
    %96 = vector.shape_cast %93 : vector<8x8xf32> to vector<1x1x8x8xf32>
    tpu.vector_store %arg16[%c0_43, %c3, %c0_44, %c0_45], %96 {strides = array<i32>} : memref<1x4x8x8xf32, #tpu.memory_space<vmem>>, vector<1x1x8x8xf32>,
    %97 = arith.truncf %93 : vector<8x8xf32> to vector<8x8xbf16>
    %cst_46 = arith.constant dense<0.000000e+00> : vector<8x8xf32>
    %98 = tpu.matmul %97, %82, %cst_46 {dimension_numbers = #tpu.dot_dimension_numbers<[1], [0], [0], [1], [0, 0, 1, 1], [], []>} : vector<8x8xbf16>, vector<8x8xbf16>, vector<8x8xf32> -> vector<8x8xf32>
    %99 = arith.truncf %98 : vector<8x8xf32> to vector<8x8xbf16>
    %c24 = arith.constant 24 : index
    %c0_47 = arith.constant 0 : index
    %100 = vector.load %arg18[%c24, %c0_47] : memref<32x32xbf16, #tpu.memory_space<vmem>>, vector<8x32xbf16>
    %cst_48 = arith.constant dense<0.000000e+00> : vector<8x32xf32>
    %101 = tpu.matmul %99, %100, %cst_48 {dimension_numbers = #tpu.dot_dimension_numbers<[1], [0], [0], [1], [0, 0, 1, 1], [], []>} : vector<8x8xbf16>, vector<8x32xbf16>, vector<8x32xf32> -> vector<8x32xf32>
    %102 = arith.addf %79, %101 : vector<8x32xf32>
    %103 = arith.addf %7, %102 : vector<8x32xf32>
    %c0_49 = arith.constant 0 : index
    %c0_50 = arith.constant 0 : index
    %104 = vector.load %arg8[%c0_49, %c0_50] : memref<1x32xf32, #tpu.memory_space<vmem>>, vector<1x32xf32>
    %105 = vector.broadcast %104 : vector<1x32xf32> to vector<8x32xf32>
    %106 = arith.addf %103, %105 : vector<8x32xf32>
    %c0_51 = arith.constant 0 : index
    %c0_52 = arith.constant 0 : index
    %107 = vector.load %arg11[%c0_51, %c0_52] : memref<1x32xf32, #tpu.memory_space<vmem>>, vector<1x32xf32>
    %c0_53 = arith.constant 0 : index
    %c0_54 = arith.constant 0 : index
    %108 = vector.load %arg12[%c0_53, %c0_54] : memref<1x32xf32, #tpu.memory_space<vmem>>, vector<1x32xf32>
    %cst_55 = arith.constant dense<0.000000e+00> : vector<8xf32>
    %109 = vector.multi_reduction <add>, %106, %cst_55 [1] : vector<8x32xf32> to vector<8xf32>
    %110 = vector.shape_cast %109 : vector<8xf32> to vector<8x1xf32>
    %cst_56 = arith.constant 3.200000e+01 : f32
    %111 = vector.broadcast %cst_56 : f32 to vector<8x1xf32>
    %112 = arith.divf %110, %111 : vector<8x1xf32>
    %113 = vector.broadcast %112 : vector<8x1xf32> to vector<8x32xf32>
    %114 = arith.subf %106, %113 : vector<8x32xf32>
    %115 = arith.mulf %114, %114 : vector<8x32xf32>
    %cst_57 = arith.constant dense<0.000000e+00> : vector<8xf32>
    %116 = vector.multi_reduction <add>, %115, %cst_57 [1] : vector<8x32xf32> to vector<8xf32>
    %117 = vector.shape_cast %116 : vector<8xf32> to vector<8x1xf32>
    %cst_58 = arith.constant 3.200000e+01 : f32
    %118 = vector.broadcast %cst_58 : f32 to vector<8x1xf32>
    %119 = arith.divf %117, %118 : vector<8x1xf32>
    %cst_59 = arith.constant 9.99999974E-6 : f32
    %120 = vector.broadcast %cst_59 : f32 to vector<8x1xf32>
    %121 = arith.addf %119, %120 : vector<8x1xf32>
    %122 = math.rsqrt %121 : vector<8x1xf32>
    %123 = vector.broadcast %122 : vector<8x1xf32> to vector<8x32xf32>
    %124 = arith.mulf %114, %123 : vector<8x32xf32>
    %125 = vector.broadcast %107 : vector<1x32xf32> to vector<8x32xf32>
    %126 = arith.mulf %124, %125 : vector<8x32xf32>
    %127 = vector.broadcast %108 : vector<1x32xf32> to vector<8x32xf32>
    %128 = arith.addf %126, %127 : vector<8x32xf32>
    %129 = arith.truncf %128 : vector<8x32xf32> to vector<8x32xbf16>
    %c0_60 = arith.constant 0 : index
    %c0_61 = arith.constant 0 : index
    %130 = vector.load %arg19[%c0_60, %c0_61] : memref<32x64xbf16, #tpu.memory_space<vmem>>, vector<32x64xbf16>
    %cst_62 = arith.constant dense<0.000000e+00> : vector<8x64xf32>
    %131 = tpu.matmul %129, %130, %cst_62 {dimension_numbers = #tpu.dot_dimension_numbers<[1], [0], [0], [1], [0, 0, 1, 1], [], []>} : vector<8x32xbf16>, vector<32x64xbf16>, vector<8x64xf32> -> vector<8x64xf32>
    %c0_63 = arith.constant 0 : index
    %c0_64 = arith.constant 0 : index
    %132 = vector.load %arg13[%c0_63, %c0_64] : memref<1x64xf32, #tpu.memory_space<vmem>>, vector<1x64xf32>
    %133 = vector.broadcast %132 : vector<1x64xf32> to vector<8x64xf32>
    %134 = arith.addf %131, %133 : vector<8x64xf32>
    %cst_65 = arith.constant 5.000000e-01 : f32
    %135 = vector.broadcast %cst_65 : f32 to vector<8x64xf32>
    %136 = arith.mulf %135, %134 : vector<8x64xf32>
    %cst_66 = arith.constant 0.707106769 : f32
    %137 = vector.broadcast %cst_66 : f32 to vector<8x64xf32>
    %138 = arith.mulf %134, %137 : vector<8x64xf32>
    %139 = math.erf %138 : vector<8x64xf32>
    %cst_67 = arith.constant 1.000000e+00 : f32
    %140 = vector.broadcast %cst_67 : f32 to vector<8x64xf32>
    %141 = arith.addf %140, %139 : vector<8x64xf32>
    %142 = arith.mulf %136, %141 : vector<8x64xf32>
    %143 = arith.truncf %142 : vector<8x64xf32> to vector<8x64xbf16>
    %c0_68 = arith.constant 0 : index
    %c0_69 = arith.constant 0 : index
    %144 = vector.load %arg20[%c0_68, %c0_69] : memref<64x32xbf16, #tpu.memory_space<vmem>>, vector<64x32xbf16>
    %cst_70 = arith.constant dense<0.000000e+00> : vector<8x32xf32>
    %145 = tpu.matmul %143, %144, %cst_70 {dimension_numbers = #tpu.dot_dimension_numbers<[1], [0], [0], [1], [0, 0, 1, 1], [], []>} : vector<8x64xbf16>, vector<64x32xbf16>, vector<8x32xf32> -> vector<8x32xf32>
    %c0_71 = arith.constant 0 : index
    %c0_72 = arith.constant 0 : index
    %146 = vector.load %arg14[%c0_71, %c0_72] : memref<1x32xf32, #tpu.memory_space<vmem>>, vector<1x32xf32>
    %147 = vector.broadcast %146 : vector<1x32xf32> to vector<8x32xf32>
    %148 = arith.addf %145, %147 : vector<8x32xf32>
    %149 = arith.addf %106, %148 : vector<8x32xf32>
    %c0_73 = arith.constant 0 : index
    %c0_74 = arith.constant 0 : index
    %c0_75 = arith.constant 0 : index
    %150 = vector.load %arg15[%c0_73, %c0_74, %c0_75] : memref<1x8x32xf32, #tpu.memory_space<vmem>>, vector<1x8x32xf32>
    %151 = vector.shape_cast %150 : vector<1x8x32xf32> to vector<8x32xf32>
    %152 = vector.shape_cast %149 : vector<8x32xf32> to vector<1x8x32xf32>
    tpu.vector_store %arg15[%c0_73, %c0_74, %c0_75], %152 {strides = array<i32>} : memref<1x8x32xf32, #tpu.memory_space<vmem>>, vector<1x8x32xf32>,
    return
  }
  func.func @transform_0(%arg0: i32, %arg1: i32) -> (i32, i32, i32) {
    %c0_i32 = arith.constant 0 : i32
    %c0_i32_0 = arith.constant 0 : i32
    %c0_i32_1 = arith.constant 0 : i32
    return %arg0, %c0_i32, %c0_i32_0 : i32, i32, i32
  }
  func.func @transform_5(%arg0: i32, %arg1: i32) -> (i32, i32) {
    %c0_i32 = arith.constant 0 : i32
    %c0_i32_0 = arith.constant 0 : i32
    %c0_i32_1 = arith.constant 0 : i32
    return %c0_i32, %c0_i32_0 : i32, i32
  }
  func.func @transform_6(%arg0: i32, %arg1: i32) -> (i32, i32) {
    %c0_i32 = arith.constant 0 : i32
    %c0_i32_0 = arith.constant 0 : i32
    %c0_i32_1 = arith.constant 0 : i32
    return %c0_i32, %c0_i32_0 : i32, i32
  }
  func.func @transform_7(%arg0: i32, %arg1: i32) -> (i32, i32) {
    %c0_i32 = arith.constant 0 : i32
    %c0_i32_0 = arith.constant 0 : i32
    %c0_i32_1 = arith.constant 0 : i32
    return %c0_i32, %c0_i32_0 : i32, i32
  }
  func.func @transform_8(%arg0: i32, %arg1: i32) -> (i32, i32) {
    %c0_i32 = arith.constant 0 : i32
    %c0_i32_0 = arith.constant 0 : i32
    %c0_i32_1 = arith.constant 0 : i32
    return %c0_i32, %c0_i32_0 : i32, i32
  }
  func.func @transform_9(%arg0: i32, %arg1: i32) -> (i32, i32) {
    %c0_i32 = arith.constant 0 : i32
    %c0_i32_0 = arith.constant 0 : i32
    %c0_i32_1 = arith.constant 0 : i32
    return %c0_i32, %c0_i32_0 : i32, i32
  }
  func.func @transform_10(%arg0: i32, %arg1: i32) -> (i32, i32) {
    %c0_i32 = arith.constant 0 : i32
    %c0_i32_0 = arith.constant 0 : i32
    %c0_i32_1 = arith.constant 0 : i32
    return %c0_i32, %c0_i32_0 : i32, i32
  }
  func.func @transform_11(%arg0: i32, %arg1: i32) -> (i32, i32) {
    %c0_i32 = arith.constant 0 : i32
    %c0_i32_0 = arith.constant 0 : i32
    %c0_i32_1 = arith.constant 0 : i32
    return %c0_i32, %c0_i32_0 : i32, i32
  }
  func.func @transform_12(%arg0: i32, %arg1: i32) -> (i32, i32) {
    %c0_i32 = arith.constant 0 : i32
    %c0_i32_0 = arith.constant 0 : i32
    %c0_i32_1 = arith.constant 0 : i32
    return %c0_i32, %c0_i32_0 : i32, i32
  }
  func.func @transform_13(%arg0: i32, %arg1: i32) -> (i32, i32, i32) {
    %c0_i32 = arith.constant 0 : i32
    %c0_i32_0 = arith.constant 0 : i32
    return %arg0, %arg1, %c0_i32 : i32, i32, i32
  }
  func.func @transform_14(%arg0: i32, %arg1: i32) -> (i32, i32, i32, i32) {
    %c0_i32 = arith.constant 0 : i32
    %c0_i32_0 = arith.constant 0 : i32
    %c0_i32_1 = arith.constant 0 : i32
    return %arg0, %c0_i32, %arg1, %c0_i32_0 : i32, i32, i32, i32
  }
}

</mosaic_0001>

<llo_original>
// kernel: tpu_custom_call.1
$region0: #{tpu_custom_call.1}
  #allocation0 [shape = 'u32[]', space=smem, size = 0x4, offset = 0x4, fixed_abs, tag = 'smem constant byte address 0x4 - core index']
  #allocation1 [shape = 'u32[72,128]{1,0:T(1,128)}', space=vmem, size = 0x9000, scoped, tag = 'internal scratch']
  #allocation2 [shape = 'bf16[32,96]{1,0:T(8,128)(2,1)}', space=vmem, size = 0x2000, scoped, tag = 'scratch operand']
  #allocation3 [shape = 'bf16[32,32]{1,0:T(8,128)(2,1)}', space=vmem, size = 0x2000, scoped, tag = 'scratch operand']
  #allocation4 [shape = 'bf16[32,64]{1,0:T(8,128)(2,1)}', space=vmem, size = 0x2000, scoped, tag = 'scratch operand']
  #allocation5 [shape = 'bf16[64,32]{1,0:T(8,128)(2,1)}', space=vmem, size = 0x4000, scoped, tag = 'scratch operand']
  #allocation6 [shape = 'bf16[8,96]{1,0:T(8,128)(2,1)}', space=vmem, size = 0x800, scoped, tag = 'scratch operand']
  #allocation7 [shape = 's32[4]{0}', space=sflag, size = 0x10, scoped, tag = 'scratch operand']
  #allocation12 [shape = 's32[]', space=sflag, size = 0x4, offset = 0, fixed_abs, tag = 'sflag constant byte address 0x0 - dummy sync flag']
  #allocation13 [shape = 's32[]', space=sflag, size = 0x4, offset = 0, fixed_abs, tag = 'sflag constant byte address 0x0 - dummy sync flag']
  #allocation14 [shape = 's32[]', space=sflag, size = 0x4, offset = 0, fixed_abs, tag = 'sflag constant byte address 0x0 - dummy sync flag']
  #allocation15 [shape = 's32[]', space=sflag, size = 0x4, offset = 0, fixed_abs, tag = 'sflag constant byte address 0x0 - dummy sync flag']
  #allocation16 [shape = 'u32[]', space=smem, size = 0x4, offset = 0x44, fixed_abs, tag = 'smem constant byte address 0x44 - assertion arg 0']
  #allocation17 [shape = 'u32[]', space=smem, size = 0x4, offset = 0x48, fixed_abs, tag = 'smem constant byte address 0x48 - assertion arg 1']
  #allocation18 [shape = 's32[]', space=sflag, size = 0x4, offset = 0, fixed_abs, tag = 'sflag constant byte address 0x0 - dummy sync flag']
  %s0 = inlined_call_operand.vmem [shape: f32[2,8,32], index: 0, kind: input, shape index: {}]
  %s1 = inlined_call_operand.vmem [shape: bf16[32,96], index: 1, kind: input, shape index: {}]
  %s2 = inlined_call_operand.vmem [shape: bf16[32,32], index: 2, kind: input, shape index: {}]
  %s3 = inlined_call_operand.hbm [shape: bf16[32,64], index: 3, kind: input, shape index: {}]
  %s4 = inlined_call_operand.vmem [shape: bf16[64,32], index: 4, kind: input, shape index: {}]
  %s5 = inlined_call_operand.vmem [shape: f32[1,96], index: 5, kind: input, shape index: {}]
  %s6 = inlined_call_operand.vmem [shape: f32[1,32], index: 6, kind: input, shape index: {}]
  %s7 = inlined_call_operand.vmem [shape: f32[1,32], index: 7, kind: input, shape index: {}]
  %s8 = inlined_call_operand.vmem [shape: f32[1,32], index: 8, kind: input, shape index: {}]
  %s9 = inlined_call_operand.vmem [shape: f32[1,32], index: 9, kind: input, shape index: {}]
  %s10 = inlined_call_operand.vmem [shape: f32[1,32], index: 10, kind: input, shape index: {}]
  %s11 = inlined_call_operand.vmem [shape: f32[1,64], index: 11, kind: input, shape index: {}]
  %s12 = inlined_call_operand.vmem [shape: f32[1,32], index: 12, kind: input, shape index: {}]
  %s13 = inlined_call_operand.hbm [shape: f32[2,8,32], index: 13, kind: output, shape index: {0}]
  %s14 = inlined_call_operand.hbm [shape: f32[2,4,8,8], index: 14, kind: output, shape index: {1}]
  %15 = xla_tuple %s13, %s14
  %s16 = sld [smem:[#allocation0]]
  $region142: #{tpu_custom_call.1} parent=0
    _
  %s18 = ssub.s32 1, %s16
  %s19 = scalar_select 0, %s18, %s16
  $region1: #{tpu_custom_call.1} parent=0
    #allocation8 [shape = 'u8[8192]{0}', space=vmem, size = 0x2000, scoped, tag = 'output window, operand 0']
    #allocation9 [shape = 's32[2]{0}', space=sflag, size = 0x8, scoped, tag = 'scoped memory for tpu_custom_call.1']
    #allocation10 [shape = 'u8[32768]{0}', space=vmem, size = 0x8000, scoped, tag = 'output window, operand 1']
    #allocation11 [shape = 's32[2]{0}', space=sflag, size = 0x8, scoped, tag = 'scoped memory for tpu_custom_call.1']
    %20 = vsyncpa [#allocation9], 0
    %s21 = scalar_lea.sflag [#allocation9], 1
    %22 = vsyncpa %s21, 0
    %23 = vsyncpa [#allocation11], 0
    %s24 = scalar_lea.sflag [#allocation11], 1
    %25 = vsyncpa %s24, 0
    loop: start=0, step=1, limit=4
    $region2: #{tpu_custom_call.1} parent=1 // loop_pre_header
      _
    $region3: #{tpu_custom_call.1} parent=1 // loop_header
      %s27 = sphi 0, %s31
      %p28 = scmp.ge.s32.totalorder %s27, 4
      %s34 = sphi 0, %s46
      %s35 = sphi 0, %s42
      %s36 = sphi 0, %s34
      %s37 = sphi 0, %s35
      %s38 = sphi 0, %s36
      %s39 = sphi 0, %s37
      %s49 = sphi 0, %s51
      %s52 = sphi 0, %s49
      %s53 = sphi 0, %s52
      %s69 = sphi 0, %s53
      %s73 = sphi 0, %s73
      %s75 = sphi 0, %s73
      %s76 = sphi 0, %s75
      %s90 = sphi 0, %s76
      %s94 = sphi 0, %s94
      %s96 = sphi 0, %s94
      %s97 = sphi 0, %s96
      %s111 = sphi 0, %s97
      %s115 = sphi 0, %s115
      %s117 = sphi 0, %s115
      %s118 = sphi 0, %s117
      %s132 = sphi 0, %s118
      %s136 = sphi 0, %s136
      %s138 = sphi 0, %s136
      %s139 = sphi 0, %s138
      %s153 = sphi 0, %s139
      %s157 = sphi 0, %s157
      %s159 = sphi 0, %s157
      %s160 = sphi 0, %s159
      %s174 = sphi 0, %s160
      %s178 = sphi 0, %s178
      %s180 = sphi 0, %s178
      %s181 = sphi 0, %s180
      %s195 = sphi 0, %s181
      %s199 = sphi 0, %s199
      %s201 = sphi 0, %s199
      %s202 = sphi 0, %s201
      %s216 = sphi 0, %s202
      %s220 = sphi 0, %s220
      %s222 = sphi 0, %s220
      %s223 = sphi 0, %s222
      %s237 = sphi 0, %s223
      %s245 = sphi 0, %s247
      %s248 = sphi 0, %s245
      %s249 = sphi 0, %s248
      %s265 = sphi 0, %s249
      %s273 = sphi 0, %s275
      %s276 = sphi 0, %s273
      %s277 = sphi 0, %s276
      %s293 = sphi 0, %s277
    $region4: #{tpu_custom_call.1} parent=1 // loop_header_branch
      %30 = sbr.rel (%p28) target = $region8
    $region5: #{tpu_custom_call.1} parent=1 // loop_body
      %s32 = ssub.s32 %s27, 1
      %s33 = ssub.s32 %s27, 2
      %s40 = sadd.s32 1, %s35
      %p41 = scmp.ge.s32.totalorder %s40, 1
      %s42 = scalar_select %p41, 0, %s40
      %s43 = sadd.s32 1, %s34
      %s44 = scalar_select %p41, %s43, %s34
      %p45 = scmp.ge.s32.totalorder %s44, 2
      %s46 = scalar_select %p45, 0, %s44
      %s47 = ssub.s32 %s34, %s46
      %p48 = scmp.eq.s32.totalorder %s47, 0
      %s50 = sadd.s32 %s49, 1
      %s51 = scalar_select %p48, %s49, %s50
      %p54 = pneg %p48
      %p55 = scmp.eq.s32.totalorder %s27, 1
      %p56 = por %p54, %p55
      %p57 = scmp.ne.s32.totalorder %s49, %s52
      %p58 = scmp.eq.s32.totalorder %s27, 0
      %p59 = por %p57, %p58
      %p60 = scmp.ne.s32.totalorder %s49, %s52
      %p61 = scmp.eq.s32.totalorder %s32, 1
      %p62 = por %p60, %p61
      %p63 = scmp.ne.s32.totalorder %s52, %s53
      %p64 = scmp.eq.s32.totalorder %s32, 0
      %p65 = por %p63, %p64
      %p66 = scmp.ne.s32.totalorder %s52, %s53
      %p67 = scmp.eq.s32.totalorder %s33, 1
      %p68 = por %p66, %p67
      %p70 = scmp.ne.s32.totalorder %s53, %s69
      %p71 = scmp.eq.s32.totalorder %s33, 0
      %p72 = por %p70, %p71
      %s74 = sadd.s32 %s73, 1
      %p77 = scmp.eq.s32.totalorder %s27, 1
      %p78 = scmp.ne.s32.totalorder %s73, %s75
      %p79 = scmp.eq.s32.totalorder %s27, 0
      %p80 = por %p78, %p79
      %p81 = scmp.ne.s32.totalorder %s73, %s75
      %p82 = scmp.eq.s32.totalorder %s32, 1
      %p83 = por %p81, %p82
      %p84 = scmp.ne.s32.totalorder %s75, %s76
      %p85 = scmp.eq.s32.totalorder %s32, 0
      %p86 = por %p84, %p85
      %p87 = scmp.ne.s32.totalorder %s75, %s76
      %p88 = scmp.eq.s32.totalorder %s33, 1
      %p89 = por %p87, %p88
      %p91 = scmp.ne.s32.totalorder %s76, %s90
      %p92 = scmp.eq.s32.totalorder %s33, 0
      %p93 = por %p91, %p92
      %s95 = sadd.s32 %s94, 1
      %p98 = scmp.eq.s32.totalorder %s27, 1
      %p99 = scmp.ne.s32.totalorder %s94, %s96
      %p100 = scmp.eq.s32.totalorder %s27, 0
      %p101 = por %p99, %p100
      %p102 = scmp.ne.s32.totalorder %s94, %s96
      %p103 = scmp.eq.s32.totalorder %s32, 1
      %p104 = por %p102, %p103
      %p105 = scmp.ne.s32.totalorder %s96, %s97
      %p106 = scmp.eq.s32.totalorder %s32, 0
      %p107 = por %p105, %p106
      %p108 = scmp.ne.s32.totalorder %s96, %s97
      %p109 = scmp.eq.s32.totalorder %s33, 1
      %p110 = por %p108, %p109
      %p112 = scmp.ne.s32.totalorder %s97, %s111
      %p113 = scmp.eq.s32.totalorder %s33, 0
      %p114 = por %p112, %p113
      %s116 = sadd.s32 %s115, 1
      %p119 = scmp.eq.s32.totalorder %s27, 1
      %p120 = scmp.ne.s32.totalorder %s115, %s117
      %p121 = scmp.eq.s32.totalorder %s27, 0
      %p122 = por %p120, %p121
      %p123 = scmp.ne.s32.totalorder %s115, %s117
      %p124 = scmp.eq.s32.totalorder %s32, 1
      %p125 = por %p123, %p124
      %p126 = scmp.ne.s32.totalorder %s117, %s118
      %p127 = scmp.eq.s32.totalorder %s32, 0
      %p128 = por %p126, %p127
      %p129 = scmp.ne.s32.totalorder %s117, %s118
      %p130 = scmp.eq.s32.totalorder %s33, 1
      %p131 = por %p129, %p130
      %p133 = scmp.ne.s32.totalorder %s118, %s132
      %p134 = scmp.eq.s32.totalorder %s33, 0
      %p135 = por %p133, %p134
      %s137 = sadd.s32 %s136, 1
      %p140 = scmp.eq.s32.totalorder %s27, 1
      %p141 = scmp.ne.s32.totalorder %s136, %s138
      %p142 = scmp.eq.s32.totalorder %s27, 0
      %p143 = por %p141, %p142
      %p144 = scmp.ne.s32.totalorder %s136, %s138
      %p145 = scmp.eq.s32.totalorder %s32, 1
      %p146 = por %p144, %p145
      %p147 = scmp.ne.s32.totalorder %s138, %s139
      %p148 = scmp.eq.s32.totalorder %s32, 0
      %p149 = por %p147, %p148
      %p150 = scmp.ne.s32.totalorder %s138, %s139
      %p151 = scmp.eq.s32.totalorder %s33, 1
      %p152 = por %p150, %p151
      %p154 = scmp.ne.s32.totalorder %s139, %s153
      %p155 = scmp.eq.s32.totalorder %s33, 0
      %p156 = por %p154, %p155
      %s158 = sadd.s32 %s157, 1
      %p161 = scmp.eq.s32.totalorder %s27, 1
      %p162 = scmp.ne.s32.totalorder %s157, %s159
      %p163 = scmp.eq.s32.totalorder %s27, 0
      %p164 = por %p162, %p163
      %p165 = scmp.ne.s32.totalorder %s157, %s159
      %p166 = scmp.eq.s32.totalorder %s32, 1
      %p167 = por %p165, %p166
      %p168 = scmp.ne.s32.totalorder %s159, %s160
      %p169 = scmp.eq.s32.totalorder %s32, 0
      %p170 = por %p168, %p169
      %p171 = scmp.ne.s32.totalorder %s159, %s160
      %p172 = scmp.eq.s32.totalorder %s33, 1
      %p173 = por %p171, %p172
      %p175 = scmp.ne.s32.totalorder %s160, %s174
      %p176 = scmp.eq.s32.totalorder %s33, 0
      %p177 = por %p175, %p176
      %s179 = sadd.s32 %s178, 1
      %p182 = scmp.eq.s32.totalorder %s27, 1
      %p183 = scmp.ne.s32.totalorder %s178, %s180
      %p184 = scmp.eq.s32.totalorder %s27, 0
      %p185 = por %p183, %p184
      %p186 = scmp.ne.s32.totalorder %s178, %s180
      %p187 = scmp.eq.s32.totalorder %s32, 1
      %p188 = por %p186, %p187
      %p189 = scmp.ne.s32.totalorder %s180, %s181
      %p190 = scmp.eq.s32.totalorder %s32, 0
      %p191 = por %p189, %p190
      %p192 = scmp.ne.s32.totalorder %s180, %s181
      %p193 = scmp.eq.s32.totalorder %s33, 1
      %p194 = por %p192, %p193
      %p196 = scmp.ne.s32.totalorder %s181, %s195
      %p197 = scmp.eq.s32.totalorder %s33, 0
      %p198 = por %p196, %p197
      %s200 = sadd.s32 %s199, 1
      %p203 = scmp.eq.s32.totalorder %s27, 1
      %p204 = scmp.ne.s32.totalorder %s199, %s201
      %p205 = scmp.eq.s32.totalorder %s27, 0
      %p206 = por %p204, %p205
      %p207 = scmp.ne.s32.totalorder %s199, %s201
      %p208 = scmp.eq.s32.totalorder %s32, 1
      %p209 = por %p207, %p208
      %p210 = scmp.ne.s32.totalorder %s201, %s202
      %p211 = scmp.eq.s32.totalorder %s32, 0
      %p212 = por %p210, %p211
      %p213 = scmp.ne.s32.totalorder %s201, %s202
      %p214 = scmp.eq.s32.totalorder %s33, 1
      %p215 = por %p213, %p214
      %p217 = scmp.ne.s32.totalorder %s202, %s216
      %p218 = scmp.eq.s32.totalorder %s33, 0
      %p219 = por %p217, %p218
      %s221 = sadd.s32 %s220, 1
      %p224 = scmp.eq.s32.totalorder %s27, 1
      %p225 = scmp.ne.s32.totalorder %s220, %s222
      %p226 = scmp.eq.s32.totalorder %s27, 0
      %p227 = por %p225, %p226
      %p228 = scmp.ne.s32.totalorder %s220, %s222
      %p229 = scmp.eq.s32.totalorder %s32, 1
      %p230 = por %p228, %p229
      %p231 = scmp.ne.s32.totalorder %s222, %s223
      %p232 = scmp.eq.s32.totalorder %s32, 0
      %p233 = por %p231, %p232
      %p234 = scmp.ne.s32.totalorder %s222, %s223
      %p235 = scmp.eq.s32.totalorder %s33, 1
      %p236 = por %p234, %p235
      %p238 = scmp.ne.s32.totalorder %s223, %s237
      %p239 = scmp.eq.s32.totalorder %s33, 0
      %p240 = por %p238, %p239
      %s241 = ssub.s32 %s34, %s46
      %s242 = ssub.s32 %s35, %s42
      %s243 = sor.u32 %s241, %s242
      %p244 = scmp.eq.s32.totalorder %s243, 0
      %s246 = sadd.s32 %s245, 1
      %s247 = scalar_select %p244, %s245, %s246
      %p250 = pneg %p244
      %p251 = scmp.eq.s32.totalorder %s27, 1
      %p252 = por %p250, %p251
      %p253 = scmp.ne.s32.totalorder %s245, %s248
      %p254 = scmp.eq.s32.totalorder %s27, 0
      %p255 = por %p253, %p254
      %p256 = scmp.ne.s32.totalorder %s245, %s248
      %p257 = scmp.eq.s32.totalorder %s32, 1
      %p258 = por %p256, %p257
      %p259 = scmp.ne.s32.totalorder %s248, %s249
      %p260 = scmp.eq.s32.totalorder %s32, 0
      %p261 = por %p259, %p260
      %p262 = scmp.ne.s32.totalorder %s248, %s249
      %p263 = scmp.eq.s32.totalorder %s33, 1
      %p264 = por %p262, %p263
      %p266 = scmp.ne.s32.totalorder %s249, %s265
      %p267 = scmp.eq.s32.totalorder %s33, 0
      %p268 = por %p266, %p267
      %s269 = ssub.s32 %s34, %s46
      %s270 = ssub.s32 %s35, %s42
      %s271 = sor.u32 %s269, %s270
      %p272 = scmp.eq.s32.totalorder %s271, 0
      %s274 = sadd.s32 %s273, 1
      %s275 = scalar_select %p272, %s273, %s274
      %p278 = pneg %p272
      %p279 = scmp.eq.s32.totalorder %s27, 1
      %p280 = por %p278, %p279
      %p281 = scmp.ne.s32.totalorder %s273, %s276
      %p282 = scmp.eq.s32.totalorder %s27, 0
      %p283 = por %p281, %p282
      %p284 = scmp.ne.s32.totalorder %s273, %s276
      %p285 = scmp.eq.s32.totalorder %s32, 1
      %p286 = por %p284, %p285
      %p287 = scmp.ne.s32.totalorder %s276, %s277
      %p288 = scmp.eq.s32.totalorder %s32, 0
      %p289 = por %p287, %p288
      %p290 = scmp.ne.s32.totalorder %s276, %s277
      %p291 = scmp.eq.s32.totalorder %s33, 1
      %p292 = por %p290, %p291
      %p294 = scmp.ne.s32.totalorder %s277, %s293
      %p295 = scmp.eq.s32.totalorder %s33, 0
      %p296 = por %p294, %p295
      %p297 = scmp.le.s32.totalorder 1, %s27
      %p298 = scmp.lt.s32.totalorder %s27, 3
      %p299 = pnand %p297, %p298
      %p300 = pneg %p299
      // Predicated region
      $region9: #{tpu_custom_call.1} parent=5 // pred_check
        _
      $region10: #{tpu_custom_call.1} parent=5 // pred_check_branch
        %302 = sbr.rel (%p299) target = $region12
      $region11: #{tpu_custom_call.1} parent=5 // pred_region
        %s303 = ssub.s32 %s27, 1
        // Predicated region
        $region13: #{tpu_custom_call.1} parent=11 // pred_check
          %p304 = pneg %p86
        $region14: #{tpu_custom_call.1} parent=11 // pred_check_branch
          %306 = sbr.rel (%p304) target = $region16
        $region15: #{tpu_custom_call.1} parent=11 // pred_region
          _
        $region16: #{tpu_custom_call.1} parent=11 // pred_fallthru
          _
        // Predicated region
        $region17: #{tpu_custom_call.1} parent=11 // pred_check
          %p307 = pneg %p107
        $region18: #{tpu_custom_call.1} parent=11 // pred_check_branch
          %309 = sbr.rel (%p307) target = $region20
        $region19: #{tpu_custom_call.1} parent=11 // pred_region
          _
        $region20: #{tpu_custom_call.1} parent=11 // pred_fallthru
          _
        // Predicated region
        $region21: #{tpu_custom_call.1} parent=11 // pred_check
          %p310 = pneg %p128
        $region22: #{tpu_custom_call.1} parent=11 // pred_check_branch
          %312 = sbr.rel (%p310) target = $region24
        $region23: #{tpu_custom_call.1} parent=11 // pred_region
          _
        $region24: #{tpu_custom_call.1} parent=11 // pred_fallthru
          _
        // Predicated region
        $region25: #{tpu_custom_call.1} parent=11 // pred_check
          %p313 = pneg %p149
        $region26: #{tpu_custom_call.1} parent=11 // pred_check_branch
          %315 = sbr.rel (%p313) target = $region28
        $region27: #{tpu_custom_call.1} parent=11 // pred_region
          _
        $region28: #{tpu_custom_call.1} parent=11 // pred_fallthru
          _
        // Predicated region
        $region29: #{tpu_custom_call.1} parent=11 // pred_check
          %p316 = pneg %p170
        $region30: #{tpu_custom_call.1} parent=11 // pred_check_branch
          %318 = sbr.rel (%p316) target = $region32
        $region31: #{tpu_custom_call.1} parent=11 // pred_region
          _
        $region32: #{tpu_custom_call.1} parent=11 // pred_fallthru
          _
        // Predicated region
        $region33: #{tpu_custom_call.1} parent=11 // pred_check
          %p319 = pneg %p191
        $region34: #{tpu_custom_call.1} parent=11 // pred_check_branch
          %321 = sbr.rel (%p319) target = $region36
        $region35: #{tpu_custom_call.1} parent=11 // pred_region
          _
        $region36: #{tpu_custom_call.1} parent=11 // pred_fallthru
          _
        // Predicated region
        $region37: #{tpu_custom_call.1} parent=11 // pred_check
          %p322 = pneg %p212
        $region38: #{tpu_custom_call.1} parent=11 // pred_check_branch
          %324 = sbr.rel (%p322) target = $region40
        $region39: #{tpu_custom_call.1} parent=11 // pred_region
          _
        $region40: #{tpu_custom_call.1} parent=11 // pred_fallthru
          _
        // Predicated region
        $region41: #{tpu_custom_call.1} parent=11 // pred_check
          %p325 = pneg %p233
        $region42: #{tpu_custom_call.1} parent=11 // pred_check_branch
          %327 = sbr.rel (%p325) target = $region44
        $region43: #{tpu_custom_call.1} parent=11 // pred_region
          _
        $region44: #{tpu_custom_call.1} parent=11 // pred_fallthru
          _
      $region12: #{tpu_custom_call.1} parent=5 // pred_fallthru
        _
      %p328 = scmp.lt.s32.totalorder %s27, 2
      // Predicated region
      $region45: #{tpu_custom_call.1} parent=5 // pred_check
        %p329 = pneg %p328
      $region46: #{tpu_custom_call.1} parent=5 // pred_check_branch
        %331 = sbr.rel (%p329) target = $region48
      $region47: #{tpu_custom_call.1} parent=5 // pred_region
        // Predicated region
        $region49: #{tpu_custom_call.1} parent=47 // pred_check
          %p332 = pneg %p59
        $region50: #{tpu_custom_call.1} parent=47 // pred_check_branch
          %334 = sbr.rel (%p332) target = $region52
        $region51: #{tpu_custom_call.1} parent=47 // pred_region
          %p335 = scmp.lt.s32.totalorder %s34, 1
          %s336 = scalar_select %p335, %s34, 1
          %s337 = smul.addr %s336, 8
          %s338 = scalar_lea.vmem %s0, %s337
        $region52: #{tpu_custom_call.1} parent=47 // pred_fallthru
          _
      $region48: #{tpu_custom_call.1} parent=5 // pred_fallthru
        _
      %p339 = scmp.le.s32.totalorder 1, %s27
      %p340 = scmp.lt.s32.totalorder %s27, 3
      %p341 = pnand %p339, %p340
      %p342 = pneg %p341
      // Predicated region
      $region53: #{tpu_custom_call.1} parent=5 // pred_check
        _
      $region54: #{tpu_custom_call.1} parent=5 // pred_check_branch
        %344 = sbr.rel (%p341) target = $region56
      $region55: #{tpu_custom_call.1} parent=5 // pred_region
        %s345 = ssub.s32 %s27, 1
        %p346 = scmp.lt.s32.totalorder %s36, 1
        %s347 = scalar_select %p346, %s36, 1
        %s348 = smul.addr %s347, 8
        %s349 = scalar_lea.vmem %s0, %s348
        %p350 = pneg %p65
        %p351 = pneg %p62
        %p352 = pneg %p86
        %p353 = pneg %p83
        %p354 = pneg %p107
        %p355 = pneg %p104
        %p356 = pneg %p128
        %p357 = pneg %p125
        %p358 = pneg %p149
        %p359 = pneg %p146
        %p360 = pneg %p170
        %p361 = pneg %p167
        %p362 = pneg %p191
        %p363 = pneg %p188
        %p364 = pneg %p212
        %p365 = pneg %p209
        %p366 = pneg %p233
        %p367 = pneg %p230
        %p368 = pneg %p261
        %p369 = pneg %p258
        %s370 = sand.u32 %s248, 1
        %s371 = scalar_lea.sflag [#allocation9], %s370
        %s372 = sand.u32 %s248, 1
        %s373 = smul.addr %s372, 8
        %s374 = scalar_lea.vmem [#allocation8], %s373
        %p375 = pneg %p289
        %p376 = pneg %p286
        %s377 = sand.u32 %s276, 1
        %s378 = scalar_lea.sflag [#allocation11], %s377
        %s379 = sand.u32 %s276, 1
        %s380 = smul.addr %s379, 32
        %s381 = scalar_lea.vmem [#allocation10], %s380
        %p382 = scmp.lt.s32.totalorder %s36, 1
        %s383 = scalar_select %p382, %s36, 1
        %s384 = smul.addr %s383, 8
        %s385 = scalar_lea.vmem %s0, %s384
        %p387 = scmp.eq.s32.totalorder %s37, 0
        // Predicated region
        $region57: #{tpu_custom_call.1} parent=55 // pred_check
          %p388 = pneg %p387
        $region58: #{tpu_custom_call.1} parent=55 // pred_check_branch
          %390 = sbr.rel (%p388) target = $region60
        $region59: #{tpu_custom_call.1} parent=55 // pred_region
          // Predicated region
          $region61: #{tpu_custom_call.1} parent=59 // pred_check
            _
          $region62: #{tpu_custom_call.1} parent=59 // pred_check_branch
            %392 = sbr.rel (0) target = $region64
          $region63: #{tpu_custom_call.1} parent=59 // pred_region
            loop: start=0, step=1, limit=1
            $region65: #{tpu_custom_call.1} parent=63 // loop_pre_header
              _
            $region66: #{tpu_custom_call.1} parent=63 // loop_header
              %s394 = sphi 0, %s398
              %p395 = scmp.ge.s32.totalorder %s394, 1
              %s399 = sphi %s1, %s1
              %s400 = sphi [#allocation2], [#allocation2]
            $region67: #{tpu_custom_call.1} parent=63 // loop_header_branch
              %397 = sbr.rel (%p395) target = $region71
            $region68: #{tpu_custom_call.1} parent=63 // loop_body
              %v401 = vld [vmem:[%s399] sm:$0xff]
              %402 = vst [vmem:[%s400] sm:$0xff] %v401
              %v403 = vld [vmem:[%s399 + $0x8] sm:$0xff]
              %404 = vst [vmem:[%s400 + $0x8] sm:$0xff] %v403
            $region69: #{tpu_custom_call.1} parent=63 // loop_footer
              %s398 = sadd.s32 1, %s394
            $region70: #{tpu_custom_call.1} parent=63 // loop_footer_branch
              %393 = sbr.rel target = $region66
            $region71: #{tpu_custom_call.1} parent=63 // loop_exit
              _
          $region64: #{tpu_custom_call.1} parent=59 // pred_fallthru
            _
          // Predicated region
          $region72: #{tpu_custom_call.1} parent=59 // pred_check
            _
          $region73: #{tpu_custom_call.1} parent=59 // pred_check_branch
            %406 = sbr.rel target = $region75
          $region74: #{tpu_custom_call.1} parent=59 // pred_region
            _
          $region75: #{tpu_custom_call.1} parent=59 // pred_fallthru
            _
          // Predicated region
          $region76: #{tpu_custom_call.1} parent=59 // pred_check
            _
          $region77: #{tpu_custom_call.1} parent=59 // pred_check_branch
            %409 = sbr.rel (0) target = $region79
          $region78: #{tpu_custom_call.1} parent=59 // pred_region
            %410 = vsyncadd [#allocation7], 256
          $region79: #{tpu_custom_call.1} parent=59 // pred_fallthru
            _
          %s411 = scalar_lea.sflag [#allocation7], 1
          // Predicated region
          $region80: #{tpu_custom_call.1} parent=59 // pred_check
            _
          $region81: #{tpu_custom_call.1} parent=59 // pred_check_branch
            %413 = sbr.rel (0) target = $region83
          $region82: #{tpu_custom_call.1} parent=59 // pred_region
            loop: start=0, step=1, limit=1
            $region84: #{tpu_custom_call.1} parent=82 // loop_pre_header
              _
            $region85: #{tpu_custom_call.1} parent=82 // loop_header
              %s415 = sphi 0, %s419
              %p416 = scmp.ge.s32.totalorder %s415, 1
              %s420 = sphi %s2, %s2
              %s421 = sphi [#allocation3], [#allocation3]
            $region86: #{tpu_custom_call.1} parent=82 // loop_header_branch
              %418 = sbr.rel (%p416) target = $region90
            $region87: #{tpu_custom_call.1} parent=82 // loop_body
              %v422 = vld [vmem:[%s420] sm:$0xff]
              %423 = vst [vmem:[%s421] sm:$0xff] %v422
              %v424 = vld [vmem:[%s420 + $0x8] sm:$0xff]
              %425 = vst [vmem:[%s421 + $0x8] sm:$0xff] %v424
            $region88: #{tpu_custom_call.1} parent=82 // loop_footer
              %s419 = sadd.s32 1, %s415
            $region89: #{tpu_custom_call.1} parent=82 // loop_footer_branch
              %414 = sbr.rel target = $region85
            $region90: #{tpu_custom_call.1} parent=82 // loop_exit
              _
          $region83: #{tpu_custom_call.1} parent=59 // pred_fallthru
            _
          // Predicated region
          $region91: #{tpu_custom_call.1} parent=59 // pred_check
            _
          $region92: #{tpu_custom_call.1} parent=59 // pred_check_branch
            %427 = sbr.rel target = $region94
          $region93: #{tpu_custom_call.1} parent=59 // pred_region
            _
          $region94: #{tpu_custom_call.1} parent=59 // pred_fallthru
            _
          // Predicated region
          $region95: #{tpu_custom_call.1} parent=59 // pred_check
            _
          $region96: #{tpu_custom_call.1} parent=59 // pred_check_branch
            %430 = sbr.rel (0) target = $region98
          $region97: #{tpu_custom_call.1} parent=59 // pred_region
            %431 = vsyncadd %s411, 256
          $region98: #{tpu_custom_call.1} parent=59 // pred_fallthru
            _
          %s432 = scalar_lea.sflag [#allocation7], 2
          // Predicated region
          $region99: #{tpu_custom_call.1} parent=59 // pred_check
            _
          $region100: #{tpu_custom_call.1} parent=59 // pred_check_branch
            %434 = sbr.rel target = $region102
          $region101: #{tpu_custom_call.1} parent=59 // pred_region
            %435 = sst [smem:[#allocation16]] [#allocation15]
            %436 = sst [smem:[#allocation17]] [#allocation14]
          $region102: #{tpu_custom_call.1} parent=59 // pred_fallthru
            _
          %438 = shalt.err (0)
          %s440 = sshll.u32 %s3, 4
          %s441 = int_to_ptr.hbm [resolvable:$true] %s440
          %s442 = sshll.u32 [#allocation4], 4
          %s443 = int_to_ptr.vmem [resolvable:$true] %s442
          %445 = dma.hbm_to_vmem [thread:$0]  %s441, 256, %s443, %s432
          %s446 = scalar_lea.sflag [#allocation7], 3
          // Predicated region
          $region103: #{tpu_custom_call.1} parent=59 // pred_check
            _
          $region104: #{tpu_custom_call.1} parent=59 // pred_check_branch
            %448 = sbr.rel (0) target = $region106
          $region105: #{tpu_custom_call.1} parent=59 // pred_region
            loop: start=0, step=1, limit=1
            $region107: #{tpu_custom_call.1} parent=105 // loop_pre_header
              _
            $region108: #{tpu_custom_call.1} parent=105 // loop_header
              %s450 = sphi 0, %s454
              %p451 = scmp.ge.s32.totalorder %s450, 1
              %s455 = sphi %s4, %s4
              %s456 = sphi [#allocation5], [#allocation5]
            $region109: #{tpu_custom_call.1} parent=105 // loop_header_branch
              %453 = sbr.rel (%p451) target = $region113
            $region110: #{tpu_custom_call.1} parent=105 // loop_body
              %v457 = vld [vmem:[%s455] sm:$0xff]
              %458 = vst [vmem:[%s456] sm:$0xff] %v457
              %v459 = vld [vmem:[%s455 + $0x8] sm:$0xff]
              %460 = vst [vmem:[%s456 + $0x8] sm:$0xff] %v459
              %v461 = vld [vmem:[%s455 + $0x10] sm:$0xff]
              %462 = vst [vmem:[%s456 + $0x10] sm:$0xff] %v461
              %v463 = vld [vmem:[%s455 + $0x18] sm:$0xff]
              %464 = vst [vmem:[%s456 + $0x18] sm:$0xff] %v463
            $region111: #{tpu_custom_call.1} parent=105 // loop_footer
              %s454 = sadd.s32 1, %s450
            $region112: #{tpu_custom_call.1} parent=105 // loop_footer_branch
              %449 = sbr.rel target = $region108
            $region113: #{tpu_custom_call.1} parent=105 // loop_exit
              _
          $region106: #{tpu_custom_call.1} parent=59 // pred_fallthru
            _
          // Predicated region
          $region114: #{tpu_custom_call.1} parent=59 // pred_check
            _
          $region115: #{tpu_custom_call.1} parent=59 // pred_check_branch
            %466 = sbr.rel target = $region117
          $region116: #{tpu_custom_call.1} parent=59 // pred_region
            _
          $region117: #{tpu_custom_call.1} parent=59 // pred_fallthru
            _
          // Predicated region
          $region118: #{tpu_custom_call.1} parent=59 // pred_check
            _
          $region119: #{tpu_custom_call.1} parent=59 // pred_check_branch
            %469 = sbr.rel (0) target = $region121
          $region120: #{tpu_custom_call.1} parent=59 // pred_region
            %470 = vsyncadd %s446, 512
          $region121: #{tpu_custom_call.1} parent=59 // pred_fallthru
            _
          %v471 = vld [vmem:[%s385] sm:$0xff]
          %v472 = vld [vmem:[%s7] sm:$0x1]
          %v473 = vld [vmem:[%s8] sm:$0x1]
          %vm474 = vcmask 261120
          %v475 = vsel %vm474, %v471, 0.0
          %476 = vadd.xlane.f32.xlu0 %v475
          %v477 = vpop.xlane.xlu0 %476
          %v478 = vrcp.pop 32.0
          %v479 = vmul.f32 32.0, %v478
          %v480 = vsub.f32 1.0, %v479
          %v481 = vmul.f32 %v478, %v480
          %v482 = vadd.f32 %v478, %v481
          %vm483 = vweird.f32 %v478
          %v484 = vsel %vm483, %v478, %v482
          %v485 = vmul.f32 %v477, %v484
          %v486 = vsub.f32 %v471, %v485
          %v487 = vmul.f32 %v486, %v486
          %v488 = vsel %vm474, %v487, 0.0
          %489 = vadd.xlane.f32.xlu0 %v488
          %v490 = vpop.xlane.xlu0 %489
          %v491 = vmul.f32 %v490, %v484
          %v492 = vadd.f32 %v491, 1e-05
          %v493 = vrsqrt.pop %v492
          %v494 = vmul.f32 %v493, %v492
          %v495 = vmul.f32 %v494, %v493
          %v496 = vmul.f32 0.5, %v495
          %v497 = vsub.f32 1.5, %v496
          %v498 = vmul.f32 %v493, %v497
          %vm499 = vweird.f32 %v492
          %vm500 = vweird.f32 %v493
          %vm501 = vmor %vm499, %vm500
          %v502 = vsel %vm501, %v493, %v498
          %v503 = vmul.f32 %v486, %v502
          %v505 = vperm.slane %v472, 0
          %v507 = vmul.f32 %v503, %v505
          %v509 = vperm.slane %v473, 0
          %v511 = vadd.f32 %v507, %v509
          %s512 = smul.u32 4, 4
          %s513 = smul.u32 %s512, 1
          %s514 = sshll.u32 %s513, 4
          %515 = dma.done [#allocation7], %s514
          %v516 = vpack.c.bf16 %v511, %v511
          %v517 = vld [vmem:[#allocation2] sm:$0xf]
          %v518 = vld [vmem:[#allocation2 + $0x4] sm:$0xf]
          %v519 = vld [vmem:[#allocation2 + $0x8] sm:$0xf]
          %v520 = vld [vmem:[#allocation2 + $0xc] sm:$0xf]
          %v521 = vld [vmem:[%s5] sm:$0x1]
          %v523 = vperm.slane %v521, 0
          %v529 = vunpack.c.l.b16 %v517
          %v530 = vunpack.c.l.b16 %v518
          %v531 = vunpack.c.l.b16 %v519
          %v532 = vunpack.c.l.b16 %v520
          %v533 = vpack.c.b16 %v530, %v529
          %v534 = vpack.c.b16 %v532, %v531
          %v538 = vsel %vm474, %v516, 0
          %540 = vmatpush.bf16.msra.mxu0 0
          %541 = vmatpush.bf16.msra.mxu0 0
          %542 = vmatpush.bf16.msra.mxu0 0
          %543 = vmatpush.bf16.msra.mxu0 0
          %544 = vmatpush.bf16.msra.mxu0 0
          %545 = vmatpush.bf16.msra.mxu0 0
          %546 = vmatpush.bf16.msra.mxu0 %v534
          %547 = vmatpush.bf16.msra.mxu0 %v533
          %548 = vmatmul.bf16.gmra.mxu0 %v538
          %v549 = vpop.f32.mrf.mxu0
          %v550 = vadd.f32 %v523, %v549
          %v551 = vpop.f32.mrf.mxu0
          %552 = vdwg.mxu0
          %v553 = vmul.f32 %v550, 0.35355338
          %v554 = vpack.c.bf16 %v553, %v553
          %vm555 = vcmask 257024
          %556 = vst.msk [vmem:[#allocation6] sm:$0xf] %vm555, %v554
          %v557 = vpack.c.bf16 %v550, %v550
          %vm558 = vcmask 781568
          %559 = vst.msk [vmem:[#allocation6] sm:$0xf] %vm558, %v557
          %s560 = sshll.u32 %s513, 4
          %561 = dma.done %s411, %s560
          %s562 = sshll.u32 %s513, 4
          %563 = dma.done %s432, %s562
          %s564 = smul.u32 4, 8
          %s565 = smul.u32 %s564, 1
          %s566 = sshll.u32 %s565, 4
          %567 = dma.done %s446, %s566
        $region60: #{tpu_custom_call.1} parent=55 // pred_fallthru
          _
        %s568 = smul.u32 %s37, 8
        %s569 = scalar_lea.vmem %s385, %s568
        %v570 = vld [vmem:[%s569] sm:$0xff]
        %s571 = sshra.s32 %s568, 3
        %s572 = sand.u32 %s568, 7
        %s573 = smul.addr %s571, 4
        %s574 = scalar_lea.vmem [#allocation6], %s573
        %v575 = vld [vmem:[%s574] sm:$0xf]
        %v576 = vld [vmem:[#allocation6] sm:$0xf]
        %v578 = vunpack.c.l.b16 %v576
        %v579 = vpack.c.b16 %v578, %v578
        %580 = vrot.lane.b32.xlu0 %v579, 96
        %v581 = vpop.permute.xlu0 %580
        %vm582 = vcmask 64512
        %v584 = vsel %vm582, %v575, 0
        %v587 = vsel %vm582, %v581, 0
        %589 = vmatpush.bf16.xpose.msra.mxu0 0
        %590 = vmatpush.bf16.xpose.msra.mxu0 0
        %591 = vmatpush.bf16.xpose.msra.mxu0 0
        %592 = vmatpush.bf16.xpose.msra.mxu0 0
        %593 = vmatpush.bf16.xpose.msra.mxu0 0
        %594 = vmatpush.bf16.xpose.msra.mxu0 0
        %595 = vmatpush.bf16.xpose.msra.mxu0 0
        %596 = vmatpush.bf16.xpose.msra.mxu0 %v587
        %597 = vmatmul.bf16.gmra.mxu0 %v584
        %v598 = vpop.f32.mrf.mxu0
        %v599 = vadd.f32 0.0, %v598
        %v600 = vpop.f32.mrf.mxu0
        %601 = vdwg.mxu0
        %v602 = vsel %vm582, %v599, -inf
        %603 = vmax.xlane.f32.xlu0 %v602
        %v604 = vpop.xlane.xlu0 %603
        %v605 = vsub.f32 %v599, %v604
        %v606 = vmul.f32 %v605, 1.442695
        %v607 = vpow.pop %v606
        %v608 = vsel %vm582, %v607, 0.0
        %609 = vadd.xlane.f32.xlu0 %v608
        %v610 = vpop.xlane.xlu0 %609
        %v611 = vrcp.pop %v610
        %v612 = vmul.f32 %v607, %v611
        %613 = vst.msk [vmem:[%s381] sm:$0xff] %vm582, %v612
        %v614 = vpack.c.bf16 %v612, %v612
        %615 = vrot.lane.b32.xlu0 %v579, 64
        %v616 = vpop.permute.xlu0 %615
        %v618 = vsel %vm582, %v614, 0
        %vm620 = vcmask 1043456
        %v622 = vsel %vm620, %v616, 0
        %624 = vmatpush.bf16.msra.mxu0 0
        %625 = vmatpush.bf16.msra.mxu0 0
        %626 = vmatpush.bf16.msra.mxu0 0
        %627 = vmatpush.bf16.msra.mxu0 0
        %628 = vmatpush.bf16.msra.mxu0 0
        %629 = vmatpush.bf16.msra.mxu0 0
        %630 = vmatpush.bf16.msra.mxu0 0
        %631 = vmatpush.bf16.msra.mxu0 %v622
        %632 = vmatmul.bf16.gmra.mxu0 %v618
        %v633 = vpop.f32.mrf.mxu0
        %v634 = vadd.f32 0.0, %v633
        %v635 = vpop.f32.mrf.mxu0
        %636 = vdwg.mxu0
        %v637 = vpack.c.bf16 %v634, %v634
        %v638 = vld [vmem:[#allocation3] sm:$0xf]
        %v639 = vld [vmem:[#allocation6] sm:$0xf]
        %v641 = vunpack.c.l.b16 %v575
        %v642 = vpack.c.b16 %v641, %v641
        %643 = vrot.lane.b32.xlu0 %v642, 120
        %v644 = vpop.permute.xlu0 %643
        %v646 = vunpack.c.l.b16 %v639
        %v647 = vpack.c.b16 %v646, %v646
        %648 = vrot.lane.b32.xlu0 %v647, 88
        %v649 = vpop.permute.xlu0 %648
        %v651 = vsel %vm582, %v644, 0
        %v654 = vsel %vm582, %v649, 0
        %656 = vmatpush.bf16.xpose.msra.mxu0 0
        %657 = vmatpush.bf16.xpose.msra.mxu0 0
        %658 = vmatpush.bf16.xpose.msra.mxu0 0
        %659 = vmatpush.bf16.xpose.msra.mxu0 0
        %660 = vmatpush.bf16.xpose.msra.mxu0 0
        %661 = vmatpush.bf16.xpose.msra.mxu0 0
        %662 = vmatpush.bf16.xpose.msra.mxu0 0
        %663 = vmatpush.bf16.xpose.msra.mxu0 %v654
        %664 = vmatmul.bf16.gmra.mxu0 %v651
        %v665 = vpop.f32.mrf.mxu0
        %v666 = vadd.f32 0.0, %v665
        %v667 = vpop.f32.mrf.mxu0
        %668 = vdwg.mxu0
        %v669 = vsel %vm582, %v666, -inf
        %670 = vmax.xlane.f32.xlu0 %v669
        %v671 = vpop.xlane.xlu0 %670
        %v672 = vsub.f32 %v666, %v671
        %v673 = vmul.f32 %v672, 1.442695
        %v674 = vpow.pop %v673
        %v675 = vsel %vm582, %v674, 0.0
        %676 = vadd.xlane.f32.xlu0 %v675
        %v677 = vpop.xlane.xlu0 %676
        %v678 = vrcp.pop %v677
        %v679 = vmul.f32 %v674, %v678
        %s680 = scalar_lea.vmem %s381, 8 [#allocation10]
        %681 = vst.msk [vmem:[%s680] sm:$0xff] %vm582, %v679
        %v682 = vpack.c.bf16 %v679, %v679
        %683 = vrot.lane.b32.xlu0 %v647, 56
        %v684 = vpop.permute.xlu0 %683
        %v686 = vsel %vm582, %v682, 0
        %v689 = vsel %vm620, %v684, 0
        %691 = vmatpush.bf16.msra.mxu0 0
        %692 = vmatpush.bf16.msra.mxu0 0
        %693 = vmatpush.bf16.msra.mxu0 0
        %694 = vmatpush.bf16.msra.mxu0 0
        %695 = vmatpush.bf16.msra.mxu0 0
        %696 = vmatpush.bf16.msra.mxu0 0
        %697 = vmatpush.bf16.msra.mxu0 0
        %698 = vmatpush.bf16.msra.mxu0 %v689
        %699 = vmatmul.bf16.gmra.mxu0 %v686
        %v700 = vpop.f32.mrf.mxu0
        %v701 = vadd.f32 0.0, %v700
        %v702 = vpop.f32.mrf.mxu0
        %703 = vdwg.mxu0
        %v704 = vpack.c.bf16 %v701, %v701
        %v705 = vld [vmem:[#allocation3 + $0x4] sm:$0xf]
        %v707 = vsel %vm582, %v704, 0
        %v710 = vsel %vm620, %v705, 0
        %712 = vmatpush.bf16.msra.mxu0 0
        %713 = vmatpush.bf16.msra.mxu0 0
        %714 = vmatpush.bf16.msra.mxu0 0
        %715 = vmatpush.bf16.msra.mxu0 0
        %716 = vmatpush.bf16.msra.mxu0 0
        %717 = vmatpush.bf16.msra.mxu0 0
        %718 = vmatpush.bf16.msra.mxu0 0
        %719 = vmatpush.bf16.msra.mxu0 %v710
        %720 = vmatmul.bf16.gmra.mxu0 %v707
        %v721 = vpop.f32.mrf.mxu0
        %v722 = vadd.f32 0.0, %v721
        %v723 = vpop.f32.mrf.mxu0
        %724 = vdwg.mxu0
        %v726 = vsel %vm582, %v637, 0
        %v729 = vsel %vm620, %v638, 0
        %731 = vmatpush.bf16.msra.mxu0 0
        %732 = vmatpush.bf16.msra.mxu0 0
        %733 = vmatpush.bf16.msra.mxu0 0
        %734 = vmatpush.bf16.msra.mxu0 0
        %735 = vmatpush.bf16.msra.mxu0 0
        %736 = vmatpush.bf16.msra.mxu0 0
        %737 = vmatpush.bf16.msra.mxu0 0
        %738 = vmatpush.bf16.msra.mxu0 %v729
        %739 = vmatmul.bf16.gmra.mxu0 %v726
        %v740 = vpop.f32.mrf.mxu0
        %v741 = vadd.f32 %v722, %v740
        %v742 = vpop.f32.mrf.mxu0
        %743 = vdwg.mxu0
        %v744 = vld [vmem:[#allocation6] sm:$0xf]
        %745 = vrot.lane.b32.xlu0 %v642, 112
        %v746 = vpop.permute.xlu0 %745
        %v748 = vunpack.c.l.b16 %v744
        %v749 = vpack.c.b16 %v748, %v748
        %750 = vrot.lane.b32.xlu0 %v749, 80
        %v751 = vpop.permute.xlu0 %750
        %v753 = vsel %vm582, %v746, 0
        %v756 = vsel %vm582, %v751, 0
        %758 = vmatpush.bf16.xpose.msra.mxu0 0
        %759 = vmatpush.bf16.xpose.msra.mxu0 0
        %760 = vmatpush.bf16.xpose.msra.mxu0 0
        %761 = vmatpush.bf16.xpose.msra.mxu0 0
        %762 = vmatpush.bf16.xpose.msra.mxu0 0
        %763 = vmatpush.bf16.xpose.msra.mxu0 0
        %764 = vmatpush.bf16.xpose.msra.mxu0 0
        %765 = vmatpush.bf16.xpose.msra.mxu0 %v756
        %766 = vmatmul.bf16.gmra.mxu0 %v753
        %v767 = vpop.f32.mrf.mxu0
        %v768 = vadd.f32 0.0, %v767
        %v769 = vpop.f32.mrf.mxu0
        %770 = vdwg.mxu0
        %v771 = vsel %vm582, %v768, -inf
        %772 = vmax.xlane.f32.xlu0 %v771
        %v773 = vpop.xlane.xlu0 %772
        %v774 = vsub.f32 %v768, %v773
        %v775 = vmul.f32 %v774, 1.442695
        %v776 = vpow.pop %v775
        %v777 = vsel %vm582, %v776, 0.0
        %778 = vadd.xlane.f32.xlu0 %v777
        %v779 = vpop.xlane.xlu0 %778
        %v780 = vrcp.pop %v779
        %v781 = vmul.f32 %v776, %v780
        %s782 = scalar_lea.vmem %s381, 16 [#allocation10]
        %783 = vst.msk [vmem:[%s782] sm:$0xff] %vm582, %v781
        %v784 = vpack.c.bf16 %v781, %v781
        %785 = vrot.lane.b32.xlu0 %v749, 48
        %v786 = vpop.permute.xlu0 %785
        %v788 = vsel %vm582, %v784, 0
        %v791 = vsel %vm620, %v786, 0
        %793 = vmatpush.bf16.msra.mxu0 0
        %794 = vmatpush.bf16.msra.mxu0 0
        %795 = vmatpush.bf16.msra.mxu0 0
        %796 = vmatpush.bf16.msra.mxu0 0
        %797 = vmatpush.bf16.msra.mxu0 0
        %798 = vmatpush.bf16.msra.mxu0 0
        %799 = vmatpush.bf16.msra.mxu0 0
        %800 = vmatpush.bf16.msra.mxu0 %v791
        %801 = vmatmul.bf16.gmra.mxu0 %v788
        %v802 = vpop.f32.mrf.mxu0
        %v803 = vadd.f32 0.0, %v802
        %v804 = vpop.f32.mrf.mxu0
        %805 = vdwg.mxu0
        %v806 = vpack.c.bf16 %v803, %v803
        %v807 = vld [vmem:[#allocation3 + $0x8] sm:$0xf]
        %v809 = vsel %vm582, %v806, 0
        %v812 = vsel %vm620, %v807, 0
        %814 = vmatpush.bf16.msra.mxu0 0
        %815 = vmatpush.bf16.msra.mxu0 0
        %816 = vmatpush.bf16.msra.mxu0 0
        %817 = vmatpush.bf16.msra.mxu0 0
        %818 = vmatpush.bf16.msra.mxu0 0
        %819 = vmatpush.bf16.msra.mxu0 0
        %820 = vmatpush.bf16.msra.mxu0 0
        %821 = vmatpush.bf16.msra.mxu0 %v812
        %822 = vmatmul.bf16.gmra.mxu0 %v809
        %v823 = vpop.f32.mrf.mxu0
        %v824 = vadd.f32 0.0, %v823
        %v825 = vpop.f32.mrf.mxu0
        %826 = vdwg.mxu0
        %v827 = vadd.f32 %v741, %v824
        %v828 = vld [vmem:[#allocation6] sm:$0xf]
        %829 = vrot.lane.b32.xlu0 %v642, 104
        %v830 = vpop.permute.xlu0 %829
        %v832 = vunpack.c.l.b16 %v828
        %v833 = vpack.c.b16 %v832, %v832
        %834 = vrot.lane.b32.xlu0 %v833, 72
        %v835 = vpop.permute.xlu0 %834
        %v837 = vsel %vm582, %v830, 0
        %v840 = vsel %vm582, %v835, 0
        %842 = vmatpush.bf16.xpose.msra.mxu0 0
        %843 = vmatpush.bf16.xpose.msra.mxu0 0
        %844 = vmatpush.bf16.xpose.msra.mxu0 0
        %845 = vmatpush.bf16.xpose.msra.mxu0 0
        %846 = vmatpush.bf16.xpose.msra.mxu0 0
        %847 = vmatpush.bf16.xpose.msra.mxu0 0
        %848 = vmatpush.bf16.xpose.msra.mxu0 0
        %849 = vmatpush.bf16.xpose.msra.mxu0 %v840
        %850 = vmatmul.bf16.gmra.mxu0 %v837
        %v851 = vpop.f32.mrf.mxu0
        %v852 = vadd.f32 0.0, %v851
        %v853 = vpop.f32.mrf.mxu0
        %854 = vdwg.mxu0
        %v855 = vsel %vm582, %v852, -inf
        %856 = vmax.xlane.f32.xlu0 %v855
        %v857 = vpop.xlane.xlu0 %856
        %v858 = vsub.f32 %v852, %v857
        %v859 = vmul.f32 %v858, 1.442695
        %v860 = vpow.pop %v859
        %v861 = vsel %vm582, %v860, 0.0
        %862 = vadd.xlane.f32.xlu0 %v861
        %v863 = vpop.xlane.xlu0 %862
        %v864 = vrcp.pop %v863
        %v865 = vmul.f32 %v860, %v864
        %s866 = scalar_lea.vmem %s381, 24 [#allocation10]
        %867 = vst.msk [vmem:[%s866] sm:$0xff] %vm582, %v865
        %v868 = vpack.c.bf16 %v865, %v865
        %869 = vrot.lane.b32.xlu0 %v833, 40
        %v870 = vpop.permute.xlu0 %869
        %v872 = vsel %vm582, %v868, 0
        %v875 = vsel %vm620, %v870, 0
        %877 = vmatpush.bf16.msra.mxu0 0
        %878 = vmatpush.bf16.msra.mxu0 0
        %879 = vmatpush.bf16.msra.mxu0 0
        %880 = vmatpush.bf16.msra.mxu0 0
        %881 = vmatpush.bf16.msra.mxu0 0
        %882 = vmatpush.bf16.msra.mxu0 0
        %883 = vmatpush.bf16.msra.mxu0 0
        %884 = vmatpush.bf16.msra.mxu0 %v875
        %885 = vmatmul.bf16.gmra.mxu0 %v872
        %v886 = vpop.f32.mrf.mxu0
        %v887 = vadd.f32 0.0, %v886
        %v888 = vpop.f32.mrf.mxu0
        %889 = vdwg.mxu0
        %v890 = vpack.c.bf16 %v887, %v887
        %v891 = vld [vmem:[#allocation3 + $0xc] sm:$0xf]
        %v893 = vsel %vm582, %v890, 0
        %v896 = vsel %vm620, %v891, 0
        %898 = vmatpush.bf16.msra.mxu0 0
        %899 = vmatpush.bf16.msra.mxu0 0
        %900 = vmatpush.bf16.msra.mxu0 0
        %901 = vmatpush.bf16.msra.mxu0 0
        %902 = vmatpush.bf16.msra.mxu0 0
        %903 = vmatpush.bf16.msra.mxu0 0
        %904 = vmatpush.bf16.msra.mxu0 0
        %905 = vmatpush.bf16.msra.mxu0 %v896
        %906 = vmatmul.bf16.gmra.mxu0 %v893
        %v907 = vpop.f32.mrf.mxu0
        %v908 = vadd.f32 0.0, %v907
        %v909 = vpop.f32.mrf.mxu0
        %910 = vdwg.mxu0
        %v911 = vadd.f32 %v827, %v908
        %v912 = vadd.f32 %v570, %v911
        %v913 = vld [vmem:[%s6] sm:$0x1]
        %v915 = vperm.slane %v913, 0
        %v917 = vadd.f32 %v912, %v915
        %v918 = vld [vmem:[%s9] sm:$0x1]
        %v919 = vld [vmem:[%s10] sm:$0x1]
        %vm920 = vcmask 261120
        %v921 = vsel %vm920, %v917, 0.0
        %922 = vadd.xlane.f32.xlu0 %v921
        %v923 = vpop.xlane.xlu0 %922
        %v924 = vrcp.pop 32.0
        %v925 = vmul.f32 32.0, %v924
        %v926 = vsub.f32 1.0, %v925
        %v927 = vmul.f32 %v924, %v926
        %v928 = vadd.f32 %v924, %v927
        %vm929 = vweird.f32 %v924
        %v930 = vsel %vm929, %v924, %v928
        %v931 = vmul.f32 %v923, %v930
        %v932 = vsub.f32 %v917, %v931
        %v933 = vmul.f32 %v932, %v932
        %v934 = vsel %vm920, %v933, 0.0
        %935 = vadd.xlane.f32.xlu0 %v934
        %v936 = vpop.xlane.xlu0 %935
        %v937 = vmul.f32 %v936, %v930
        %v938 = vadd.f32 %v937, 1e-05
        %v939 = vrsqrt.pop %v938
        %v940 = vmul.f32 %v939, %v938
        %v941 = vmul.f32 %v940, %v939
        %v942 = vmul.f32 0.5, %v941
        %v943 = vsub.f32 1.5, %v942
        %v944 = vmul.f32 %v939, %v943
        %vm945 = vweird.f32 %v938
        %vm946 = vweird.f32 %v939
        %vm947 = vmor %vm945, %vm946
        %v948 = vsel %vm947, %v939, %v944
        %v949 = vmul.f32 %v932, %v948
        %v951 = vperm.slane %v918, 0
        %v953 = vmul.f32 %v949, %v951
        %v955 = vperm.slane %v919, 0
        %v957 = vadd.f32 %v953, %v955
        %v958 = vpack.c.bf16 %v957, %v957
        %v959 = vld [vmem:[#allocation4] sm:$0xf]
        %v960 = vld [vmem:[#allocation4 + $0x4] sm:$0xf]
        %v961 = vld [vmem:[#allocation4 + $0x8] sm:$0xf]
        %v962 = vld [vmem:[#allocation4 + $0xc] sm:$0xf]
        %v963 = vld [vmem:[%s11] sm:$0x1]
        %v965 = vperm.slane %v963, 0
        %v971 = vunpack.c.l.b16 %v959
        %v972 = vunpack.c.l.b16 %v960
        %v973 = vunpack.c.l.b16 %v961
        %v974 = vunpack.c.l.b16 %v962
        %v975 = vpack.c.b16 %v972, %v971
        %v976 = vpack.c.b16 %v974, %v973
        %v980 = vsel %vm920, %v958, 0
        %982 = vmatpush.bf16.msra.mxu0 0
        %983 = vmatpush.bf16.msra.mxu0 0
        %984 = vmatpush.bf16.msra.mxu0 0
        %985 = vmatpush.bf16.msra.mxu0 0
        %986 = vmatpush.bf16.msra.mxu0 0
        %987 = vmatpush.bf16.msra.mxu0 0
        %988 = vmatpush.bf16.msra.mxu0 %v976
        %989 = vmatpush.bf16.msra.mxu0 %v975
        %990 = vmatmul.bf16.gmra.mxu0 %v980
        %v991 = vpop.f32.mrf.mxu0
        %v992 = vadd.f32 %v965, %v991
        %v993 = vpop.f32.mrf.mxu0
        %994 = vdwg.mxu0
        %v995 = vmul.f32 %v992, 0.5
        %v996 = vmul.f32 %v992, 0.70710677
        %v997 = vmul.f32 %v996, %v996
        %v998 = vmin.f32 16.0, %v997
        %v999 = vmul.f32 %v998, 2.1237322e-06
        %v1000 = vadd.f32 %v999, 0.00028619796
        %v1001 = vmul.f32 %v998, %v1000
        %v1002 = vadd.f32 %v1001, 0.0036580483
        %v1003 = vmul.f32 %v998, %v1002
        %v1004 = vadd.f32 %v1003, 0.05243302
        %v1005 = vmul.f32 %v998, %v1004
        %v1006 = vadd.f32 %v1005, 0.18741608
        %v1007 = vmul.f32 %v998, %v1006
        %v1008 = vadd.f32 %v1007, 1.1283791
        %v1009 = vmul.f32 %v996, %v1008
        %v1010 = vmul.f32 %v998, 3.8918573e-05
        %v1011 = vadd.f32 %v1010, 0.001143296
        %v1012 = vmul.f32 %v998, %v1011
        %v1013 = vadd.f32 %v1012, 0.014752088
        %v1014 = vmul.f32 %v998, %v1013
        %v1015 = vadd.f32 %v1014, 0.112945676
        %v1016 = vmul.f32 %v998, %v1015
        %v1017 = vadd.f32 %v1016, 0.4994258
        %v1018 = vmul.f32 %v998, %v1017
        %v1019 = vadd.f32 %v1018, 1.0
        %v1020 = vrcp.pop %v1019
        %v1021 = vmul.f32 %v1019, %v1020
        %v1022 = vsub.f32 1.0, %v1021
        %v1023 = vmul.f32 %v1020, %v1022
        %v1024 = vadd.f32 %v1020, %v1023
        %vm1025 = vweird.f32 %v1019
        %vm1026 = vweird.f32 %v1020
        %vm1027 = vmor %vm1025, %vm1026
        %v1028 = vsel %vm1027, %v1020, %v1024
        %v1029 = vand.u32 2147483647, %v1019
        %vm1030 = vcmp.eq.f32.partialorder %v1029, 8.507059e+37
        %v1031 = vand.u32 %v1019, 2147483648
        %v1032 = vor.u32 1.1754944e-38, %v1031
        %v1033 = vsel %vm1030, %v1032, %v1028
        %v1034 = vmul.f32 %v1009, %v1033
        %v1035 = vmin.f32 %v1034, 1.0
        %v1036 = vmax.f32 %v1035, -1.0
        %v1037 = vadd.f32 %v1036, 1.0
        %v1038 = vmul.f32 %v995, %v1037
        %v1039 = vpack.c.bf16 %v1038, %v1038
        %v1040 = vld [vmem:[#allocation5] sm:$0xf]
        %v1041 = vld [vmem:[#allocation5 + $0x4] sm:$0xf]
        %v1042 = vld [vmem:[#allocation5 + $0x8] sm:$0xf]
        %v1043 = vld [vmem:[#allocation5 + $0xc] sm:$0xf]
        %v1044 = vld [vmem:[#allocation5 + $0x10] sm:$0xf]
        %v1045 = vld [vmem:[#allocation5 + $0x14] sm:$0xf]
        %v1046 = vld [vmem:[#allocation5 + $0x18] sm:$0xf]
        %v1047 = vld [vmem:[#allocation5 + $0x1c] sm:$0xf]
        %v1048 = vld [vmem:[%s12] sm:$0x1]
        %v1050 = vperm.slane %v1048, 0
        %v1060 = vunpack.c.l.b16 %v1040
        %v1061 = vunpack.c.l.b16 %v1041
        %v1062 = vunpack.c.l.b16 %v1042
        %v1063 = vunpack.c.l.b16 %v1043
        %v1064 = vunpack.c.l.b16 %v1044
        %v1065 = vunpack.c.l.b16 %v1045
        %v1066 = vunpack.c.l.b16 %v1046
        %v1067 = vunpack.c.l.b16 %v1047
        %v1068 = vpack.c.b16 %v1061, %v1060
        %v1069 = vpack.c.b16 %v1063, %v1062
        %v1070 = vpack.c.b16 %v1065, %v1064
        %v1071 = vpack.c.b16 %v1067, %v1066
        %vm1076 = vcmask 523264
        %v1078 = vsel %vm1076, %v1039, 0
        %1080 = vmatpush.bf16.msra.mxu0 0
        %1081 = vmatpush.bf16.msra.mxu0 0
        %1082 = vmatpush.bf16.msra.mxu0 0
        %1083 = vmatpush.bf16.msra.mxu0 0
        %1084 = vmatpush.bf16.msra.mxu0 %v1071
        %1085 = vmatpush.bf16.msra.mxu0 %v1070
        %1086 = vmatpush.bf16.msra.mxu0 %v1069
        %1087 = vmatpush.bf16.msra.mxu0 %v1068
        %1088 = vmatmul.bf16.gmra.mxu0 %v1078
        %v1089 = vpop.f32.mrf.mxu0
        %v1090 = vadd.f32 %v1050, %v1089
        %v1091 = vpop.f32.mrf.mxu0
        %1092 = vdwg.mxu0
        %v1093 = vadd.f32 %v917, %v1090
        %1094 = vst.msk [vmem:[%s374] sm:$0xff] %vm920, %v1093
        %s1095 = sand.u32 %s248, 1
        %s1096 = scalar_lea.sflag [#allocation9], %s1095
        %s1097 = sand.u32 %s248, 1
        %s1098 = smul.addr %s1097, 8
        %s1099 = scalar_lea.vmem [#allocation8], %s1098
        %s1100 = sand.u32 %s276, 1
        %s1101 = scalar_lea.sflag [#allocation11], %s1100
        %s1102 = sand.u32 %s276, 1
        %s1103 = smul.addr %s1102, 32
        %s1104 = scalar_lea.vmem [#allocation10], %s1103
        // Predicated region
        $region122: #{tpu_custom_call.1} parent=55 // pred_check
          %p1105 = pneg %p258
        $region123: #{tpu_custom_call.1} parent=55 // pred_check_branch
          %1107 = sbr.rel (%p1105) target = $region125
        $region124: #{tpu_custom_call.1} parent=55 // pred_region
          %1109 = vsyncadd %s1096, 0
          %s1110 = sadd.s32 %s37, %s36
          %s1111 = smul.addr %s1110, 8
          %s1112 = scalar_lea.hbm %s13, %s1111
          %s1114 = sshll.u32 %s1099, 4
          %s1115 = int_to_ptr.vmem [resolvable:$true] %s1114
          %s1116 = sshll.u32 %s1112, 4
          %s1117 = int_to_ptr.hbm [resolvable:$true] %s1116
          %1119 = dma.vmem_to_hbm [thread:$0]  %s1115, 128, %s1117, %s1096
        $region125: #{tpu_custom_call.1} parent=55 // pred_fallthru
          _
        // Predicated region
        $region126: #{tpu_custom_call.1} parent=55 // pred_check
          %p1120 = pneg %p286
        $region127: #{tpu_custom_call.1} parent=55 // pred_check_branch
          %1122 = sbr.rel (%p1120) target = $region129
        $region128: #{tpu_custom_call.1} parent=55 // pred_region
          %1124 = vsyncadd %s1101, 0
          %s1125 = smul.addr %s36, 4
          %s1126 = sadd.s32 %s37, %s1125
          %s1127 = smul.addr %s1126, 8
          %s1128 = scalar_lea.hbm %s14, %s1127
          %s1129 = sshll.u32 %s1104, 4
          %s1130 = int_to_ptr.vmem [resolvable:$true] %s1129
          %s1131 = sshll.u32 %s1128, 4
          %s1132 = int_to_ptr.hbm [resolvable:$true] %s1131
          %1137 = dma.vmem_to_hbm [thread:$0]  %s1130, 512, %s1132, %s1101, 128, 128, 8
        $region129: #{tpu_custom_call.1} parent=55 // pred_fallthru
          _
      $region56: #{tpu_custom_call.1} parent=5 // pred_fallthru
        _
      %p1138 = scmp.le.s32.totalorder 2, %s27
      // Predicated region
      $region130: #{tpu_custom_call.1} parent=5 // pred_check
        %p1139 = pneg %p1138
      $region131: #{tpu_custom_call.1} parent=5 // pred_check_branch
        %1141 = sbr.rel (%p1139) target = $region133
      $region132: #{tpu_custom_call.1} parent=5 // pred_region
        %s1142 = ssub.s32 %s27, 2
        // Predicated region
        $region134: #{tpu_custom_call.1} parent=132 // pred_check
          %p1143 = pneg %p264
        $region135: #{tpu_custom_call.1} parent=132 // pred_check_branch
          %1145 = sbr.rel (%p1143) target = $region137
        $region136: #{tpu_custom_call.1} parent=132 // pred_region
          %s1146 = sand.u32 %s249, 1
          %s1147 = scalar_lea.sflag [#allocation9], %s1146
          %s1148 = sand.u32 %s249, 1
          %s1149 = smul.addr %s1148, 8
          %s1150 = scalar_lea.vmem [#allocation8], %s1149
          %1152 = dma.done %s1147, 128
        $region137: #{tpu_custom_call.1} parent=132 // pred_fallthru
          _
        // Predicated region
        $region138: #{tpu_custom_call.1} parent=132 // pred_check
          %p1153 = pneg %p292
        $region139: #{tpu_custom_call.1} parent=132 // pred_check_branch
          %1155 = sbr.rel (%p1153) target = $region141
        $region140: #{tpu_custom_call.1} parent=132 // pred_region
          %s1156 = sand.u32 %s277, 1
          %s1157 = scalar_lea.sflag [#allocation11], %s1156
          %s1158 = sand.u32 %s277, 1
          %s1159 = smul.addr %s1158, 32
          %s1160 = scalar_lea.vmem [#allocation10], %s1159
          %1162 = dma.done %s1157, 512
        $region141: #{tpu_custom_call.1} parent=132 // pred_fallthru
          _
      $region133: #{tpu_custom_call.1} parent=5 // pred_fallthru
        _
    $region6: #{tpu_custom_call.1} parent=1 // loop_footer
      %s31 = sadd.s32 1, %s27
    $region7: #{tpu_custom_call.1} parent=1 // loop_footer_branch
      %26 = sbr.rel target = $region3
    $region8: #{tpu_custom_call.1} parent=1 // loop_exit
      _
    %1163 = vsyncpa [#allocation9], 1
    %s1164 = scalar_lea.sflag [#allocation9], 1
    %1165 = vsyncpa %s1164, 1
    %1166 = vsyncpa [#allocation11], 1
    %s1167 = scalar_lea.sflag [#allocation11], 1
    %1168 = vsyncpa %s1167, 1
  %1169 = vsyncmov [#allocation7]
  %s1170 = vpop.sfrf %1169
  %p1171 = scmp.eq.s32.totalorder %s1170, 0
  %p1172 = pneg %p1171
  %1174 = shalt.err (%p1172)
  %s1175 = scalar_lea.sflag [#allocation7], 1
  %1176 = vsyncmov %s1175
  %s1177 = vpop.sfrf %1176
  %p1178 = scmp.eq.s32.totalorder %s1177, 0
  %p1179 = pneg %p1178
  %1181 = shalt.err (%p1179)
  %s1182 = scalar_lea.sflag [#allocation7], 2
  %1183 = vsyncmov %s1182
  %s1184 = vpop.sfrf %1183
  %p1185 = scmp.eq.s32.totalorder %s1184, 0
  %p1186 = pneg %p1185
  %1188 = shalt.err (%p1186)
  %s1189 = scalar_lea.sflag [#allocation7], 3
  %1190 = vsyncmov %s1189
  %s1191 = vpop.sfrf %1190
  %p1192 = scmp.eq.s32.totalorder %s1191, 0
  %p1193 = pneg %p1192
  %1195 = shalt.err (%p1193)

</llo_original>
